<compile_context>
chip_gen: v7x
topology: tpu7x:2x2x1
jax: 0.10.0
libtpu: 0.0.40
codegen_flags: <defaults>
</compile_context>

<pallas_src>
import functools

import jax
import jax.numpy as jnp
from jax.experimental import pallas as pl
from jax.experimental.pallas import tpu as pltpu


# ----------------------------------------------------------------------------
# Fused kernel: both LSTMs (block-diag) + both heads + log_softmax
# ----------------------------------------------------------------------------
def fused_forward_kernel(x_ref, wih_ref, whh_ref, b_ref, h0_ref, c0_ref,
                         whead_ref, bhead_ref, out_ref):
    T, B, _ = x_ref.shape
    G = h0_ref.shape[-1]              # combined hidden width = 2 * hidden_size

    # ---- hoisted, loop-invariant input projection for BOTH LSTMs ----------
    # block-diagonal W_ih; gate columns packed [i | f | o | g] (each G wide).
    gx = (jnp.einsum('tbf,fg->tbg', x_ref[...], wih_ref[...],
                     preferred_element_type=jnp.float32)
          + b_ref[...])                                   # (T, B, 4G)

    w_hh = whh_ref[...]               # (G, 4G) block-diagonal recurrence weight
    h = h0_ref[...]                   # (B, G) = [h_fbank | h_mfcc]
    c = c0_ref[...]

    hs = []
    # ---- serial recurrence, statically fully unrolled (T small, static) ---
    for t in range(T):
        gates = jnp.dot(h, w_hh, preferred_element_type=jnp.float32) + gx[t]
        sig = jax.nn.sigmoid(gates[:, :3 * G])            # i, f, o in one pass
        i_g = sig[:, 0:G]
        f_g = sig[:, G:2 * G]
        o_g = sig[:, 2 * G:3 * G]
        g_g = jnp.tanh(gates[:, 3 * G:])
        c = f_g * c + i_g * g_g
        h = o_g * jnp.tanh(c)
        hs.append(h)

    # ---- heads + log_softmax hoisted out of the loop -----------------------
    hs_all = jnp.concatenate(hs, axis=0)                  # (T*B, G), t-major rows
    z = (jnp.dot(hs_all, whead_ref[...], preferred_element_type=jnp.float32)
         + bhead_ref[...])                                # (T*B, 4)

    def ls2(z2):                                          # stable 2-class log_softmax
        m = jnp.maximum(z2[:, 0:1], z2[:, 1:2])
        lse = m + jnp.log(jnp.exp(z2[:, 0:1] - m) + jnp.exp(z2[:, 1:2] - m))
        return z2 - lse

    # packed lanes: 0:2 = pred_both, 2:4 = pred_mfcc — one contiguous store
    out_ref[...] = jnp.concatenate([ls2(z[:, 0:2]), ls2(z[:, 2:4])], axis=-1)


# ----------------------------------------------------------------------------
# Weight packing helpers (run in XLA, once per call; trivially cheap)
# ----------------------------------------------------------------------------
def _pack_gate_weight(w_fb, w_mf, H):
    """Block-diagonal gate weight, columns re-packed as [i | f | o | g],
    each block 2H wide: first H columns = fbank LSTM, last H = mfcc LSTM."""
    rf, rm = w_fb.shape[0], w_mf.shape[0]
    zf = jnp.zeros((rf, H), w_fb.dtype)
    zm = jnp.zeros((rm, H), w_mf.dtype)

    def blk(g):  # g indexes the original PyTorch gate order i, f, g, o
        top = jnp.concatenate([w_fb[:, g * H:(g + 1) * H], zf], axis=1)
        bot = jnp.concatenate([zm, w_mf[:, g * H:(g + 1) * H]], axis=1)
        return jnp.concatenate([top, bot], axis=0)        # (rf+rm, 2H)

    # packed order: i, f, o, g  (sigmoid gates contiguous, tanh gate last)
    return jnp.concatenate([blk(0), blk(1), blk(3), blk(2)], axis=1)


def _pack_gate_bias(b_fb, b_mf, H):
    def blk(g):
        return jnp.concatenate([b_fb[:, g * H:(g + 1) * H],
                                b_mf[:, g * H:(g + 1) * H]], axis=1)
    return jnp.concatenate([blk(0), blk(1), blk(3), blk(2)], axis=1)  # (1, 8H)


def _pack_head(wb_t, wm_t, bb, bm, H):
    w_mfcc_full = jnp.concatenate([jnp.zeros((H, 2), wm_t.dtype), wm_t], axis=0)
    w_head = jnp.concatenate([wb_t, w_mfcc_full], axis=1)             # (2H, 4)
    b_head = jnp.concatenate([bb, bm], axis=1)                        # (1, 4)
    return w_head, b_head


# ----------------------------------------------------------------------------
# Module wrapper
# ----------------------------------------------------------------------------
def init_params(key, fbank_features, mfcc_features, hidden_size, batch_size):
    ks = jax.random.split(key, 16)
    H = hidden_size

    def uni(k, shape, bound):
        return jax.random.uniform(k, shape, jnp.float32, -bound, bound)

    s_lstm = 1.0 / jnp.sqrt(H)
    return {
        # fbank LSTM (stored pre-transposed for x @ W; gate order i, f, g, o)
        'fb_wih_t': uni(ks[0], (fbank_features, 4 * H), s_lstm),
        'fb_whh_t': uni(ks[1], (H, 4 * H), s_lstm),
        'fb_b':     uni(ks[2], (1, 4 * H), s_lstm) + uni(ks[3], (1, 4 * H), s_lstm),
        # mfcc LSTM
        'mf_wih_t': uni(ks[4], (mfcc_features, 4 * H), s_lstm),
        'mf_whh_t': uni(ks[5], (H, 4 * H), s_lstm),
        'mf_b':     uni(ks[6], (1, 4 * H), s_lstm) + uni(ks[7], (1, 4 * H), s_lstm),
        # linear_both: (2H -> 2), linear_mfcc: (H -> 2)
        'wb_t': uni(ks[8], (2 * H, 2), 1.0 / jnp.sqrt(2 * H)),
        'bb':   uni(ks[9], (1, 2), 1.0 / jnp.sqrt(2 * H)),
        'wm_t': uni(ks[10], (H, 2), 1.0 / jnp.sqrt(H)),
        'bm':   uni(ks[11], (1, 2), 1.0 / jnp.sqrt(H)),
        # init_hidden_state() uses torch.randn -> fixed random params here
        'fb_h0': jax.random.normal(ks[12], (batch_size, H), jnp.float32),
        'fb_c0': jax.random.normal(ks[13], (batch_size, H), jnp.float32),
        'mf_h0': jax.random.normal(ks[14], (batch_size, H), jnp.float32),
        'mf_c0': jax.random.normal(ks[15], (batch_size, H), jnp.float32),
    }


@functools.partial(jax.jit, static_argnums=(2,))
def librosa_features_rnn_forward(x, params, fbank_features):
    # x: (batch, seq, fbank+mfcc) -- PyTorch layout.
    B, T, _ = x.shape
    H = params['fb_h0'].shape[-1]

    w_ih = _pack_gate_weight(params['fb_wih_t'], params['mf_wih_t'], H)   # (F, 8H)
    w_hh = _pack_gate_weight(params['fb_whh_t'], params['mf_whh_t'], H)   # (2H, 8H)
    b_g  = _pack_gate_bias(params['fb_b'], params['mf_b'], H)             # (1, 8H)
    w_head, b_head = _pack_head(params['wb_t'], params['wm_t'],
                                params['bb'], params['bm'], H)            # (2H,4),(1,4)
    h0 = jnp.concatenate([params['fb_h0'], params['mf_h0']], axis=1)      # (B, 2H)
    c0 = jnp.concatenate([params['fb_c0'], params['mf_c0']], axis=1)

    # (T, B, F) layout so the in-kernel per-step read is a free leading-axis index
    x_tbf = jnp.transpose(x, (1, 0, 2))

    vmem = pl.BlockSpec(memory_space=pltpu.MemorySpace.VMEM)
    packed = pl.pallas_call(
        fused_forward_kernel,
        out_shape=jax.ShapeDtypeStruct((T * B, 4), jnp.float32),
        in_specs=[vmem] * 8,
        out_specs=vmem,
    )(x_tbf, w_ih, w_hh, b_g, h0, c0, w_head, b_head)

    packed = jnp.transpose(packed.reshape(T, B, 4), (1, 0, 2))            # (B, T, 4)
    return packed[:, :, 0:2], packed[:, :, 2:4]


# ----------------------------------------------------------------------------
# Pure-JAX reference (for correctness check)
# ----------------------------------------------------------------------------
def lstm_ref(x_tbf, wih_t, whh_t, b, h0, c0):
    H = h0.shape[-1]

    def step(carry, x_t):
        h, c = carry
        gates = x_t @ wih_t + h @ whh_t + b
        i = jax.nn.sigmoid(gates[:, :H])
        f = jax.nn.sigmoid(gates[:, H:2 * H])
        g = jnp.tanh(gates[:, 2 * H:3 * H])
        o = jax.nn.sigmoid(gates[:, 3 * H:])
        c = f * c + i * g
        h = o * jnp.tanh(c)
        return (h, c), h

    _, hs = jax.lax.scan(step, (h0, c0), x_tbf)
    return hs


def forward_ref(x, params, fbank_features):
    x_fbank = jnp.transpose(x[:, :, :fbank_features], (1, 0, 2))
    x_mfcc = jnp.transpose(x[:, :, fbank_features:], (1, 0, 2))
    of = lstm_ref(x_fbank, params['fb_wih_t'], params['fb_whh_t'],
                  params['fb_b'], params['fb_h0'], params['fb_c0'])
    om = lstm_ref(x_mfcc, params['mf_wih_t'], params['mf_whh_t'],
                  params['mf_b'], params['mf_h0'], params['mf_c0'])
    out_mfcc = om @ params['wm_t'] + params['bm']
    out_both = jnp.concatenate([of, om], axis=-1) @ params['wb_t'] + params['bb']
    pb = jax.nn.log_softmax(out_both, axis=-1)
    pm = jax.nn.log_softmax(out_mfcc, axis=-1)
    return jnp.transpose(pb, (1, 0, 2)), jnp.transpose(pm, (1, 0, 2))


if __name__ == "__main__":
    FBANK, MFCC, HIDDEN, BATCH, SEQ = 16, 16, 32, 2, 8

    key = jax.random.PRNGKey(0)
    k_param, k_x = jax.random.split(key)
    params = init_params(k_param, FBANK, MFCC, HIDDEN, BATCH)
    x = jax.random.normal(k_x, (BATCH, SEQ, FBANK + MFCC), jnp.float32)

    pred_both, pred_mfcc = librosa_features_rnn_forward(x, params, FBANK)
    pred_both = jax.block_until_ready(pred_both)
    pred_mfcc = jax.block_until_ready(pred_mfcc)

    ref_both, ref_mfcc = forward_ref(x, params, FBANK)
    assert pred_both.shape == (BATCH, SEQ, 2)
    assert pred_mfcc.shape == (BATCH, SEQ, 2)
    assert jnp.allclose(pred_both, ref_both, atol=1e-4, rtol=1e-4)
    assert jnp.allclose(pred_mfcc, ref_mfcc, atol=1e-4, rtol=1e-4)

    print("KERNEL_OK")
</pallas_src>

<mosaic_0001>
module attributes {stable_mosaic.version = 11 : i64} {
  func.func @fused_forward_kernel(%arg0: memref<8x2x32xf32, #tpu.memory_space<vmem>>, %arg1: memref<32x256xf32, #tpu.memory_space<vmem>>, %arg2: memref<64x256xf32, #tpu.memory_space<vmem>>, %arg3: memref<1x256xf32, #tpu.memory_space<vmem>>, %arg4: memref<2x64xf32, #tpu.memory_space<vmem>>, %arg5: memref<2x64xf32, #tpu.memory_space<vmem>>, %arg6: memref<64x4xf32, #tpu.memory_space<vmem>>, %arg7: memref<1x4xf32, #tpu.memory_space<vmem>>, %arg8: memref<16x4xf32, #tpu.memory_space<vmem>>) attributes {dimension_semantics = [], scalar_prefetch = 0 : i64, scratch_operands = 0 : i64, tpu.core_type = #tpu.core_type<tc>} {
    %c0 = arith.constant 0 : index
    %c0_0 = arith.constant 0 : index
    %c0_1 = arith.constant 0 : index
    %0 = vector.load %arg0[%c0, %c0_0, %c0_1] : memref<8x2x32xf32, #tpu.memory_space<vmem>>, vector<8x2x32xf32>
    %c0_2 = arith.constant 0 : index
    %c0_3 = arith.constant 0 : index
    %1 = vector.load %arg1[%c0_2, %c0_3] : memref<32x256xf32, #tpu.memory_space<vmem>>, vector<32x256xf32>
    "tpu.trace_start"() <{level = 10 : i32, message = "tbf,fg->tbg"}> : () -> ()
    %cst = arith.constant dense<0.000000e+00> : vector<8x2x256xf32>
    %2 = tpu.matmul %0, %1, %cst {dimension_numbers = #tpu.dot_dimension_numbers<[2], [0], [0, 1], [1], [0, 0, 0, 1, 1, 1], [], []>} : vector<8x2x32xf32>, vector<32x256xf32>, vector<8x2x256xf32> -> vector<8x2x256xf32>
    "tpu.trace_stop"() : () -> ()
    %c0_4 = arith.constant 0 : index
    %c0_5 = arith.constant 0 : index
    %3 = vector.load %arg3[%c0_4, %c0_5] : memref<1x256xf32, #tpu.memory_space<vmem>>, vector<1x256xf32>
    %4 = vector.shape_cast %3 : vector<1x256xf32> to vector<1x1x256xf32>
    %5 = vector.broadcast %4 : vector<1x1x256xf32> to vector<8x2x256xf32>
    %6 = arith.addf %2, %5 : vector<8x2x256xf32>
    %c0_6 = arith.constant 0 : index
    %c0_7 = arith.constant 0 : index
    %7 = vector.load %arg2[%c0_6, %c0_7] : memref<64x256xf32, #tpu.memory_space<vmem>>, vector<64x256xf32>
    %c0_8 = arith.constant 0 : index
    %c0_9 = arith.constant 0 : index
    %8 = vector.load %arg4[%c0_8, %c0_9] : memref<2x64xf32, #tpu.memory_space<vmem>>, vector<2x64xf32>
    %c0_10 = arith.constant 0 : index
    %c0_11 = arith.constant 0 : index
    %9 = vector.load %arg5[%c0_10, %c0_11] : memref<2x64xf32, #tpu.memory_space<vmem>>, vector<2x64xf32>
    %cst_12 = arith.constant dense<0.000000e+00> : vector<2x256xf32>
    %10 = tpu.matmul %8, %7, %cst_12 {dimension_numbers = #tpu.dot_dimension_numbers<[1], [0], [0], [1], [0, 0, 1, 1], [], []>} : vector<2x64xf32>, vector<64x256xf32>, vector<2x256xf32> -> vector<2x256xf32>
    %11 = vector.extract_strided_slice %6 {offsets = [0, 0, 0], sizes = [1, 2, 256], strides = [1, 1, 1]} : vector<8x2x256xf32> to vector<1x2x256xf32>
    %12 = vector.shape_cast %11 : vector<1x2x256xf32> to vector<2x256xf32>
    %13 = arith.addf %10, %12 : vector<2x256xf32>
    %14 = vector.extract_strided_slice %13 {offsets = [0, 0], sizes = [2, 192], strides = [1, 1]} : vector<2x256xf32> to vector<2x192xf32>
    %15 = arith.negf %14 : vector<2x192xf32>
    %16 = math.exp %15 : vector<2x192xf32>
    %cst_13 = arith.constant 1.000000e+00 : f32
    %17 = vector.broadcast %cst_13 : f32 to vector<2x192xf32>
    %18 = arith.addf %17, %16 : vector<2x192xf32>
    %19 = arith.divf %17, %18 : vector<2x192xf32>
    %20 = vector.extract_strided_slice %19 {offsets = [0, 0], sizes = [2, 64], strides = [1, 1]} : vector<2x192xf32> to vector<2x64xf32>
    %21 = vector.extract_strided_slice %19 {offsets = [0, 64], sizes = [2, 64], strides = [1, 1]} : vector<2x192xf32> to vector<2x64xf32>
    %22 = vector.extract_strided_slice %19 {offsets = [0, 128], sizes = [2, 64], strides = [1, 1]} : vector<2x192xf32> to vector<2x64xf32>
    %23 = vector.extract_strided_slice %13 {offsets = [0, 192], sizes = [2, 64], strides = [1, 1]} : vector<2x256xf32> to vector<2x64xf32>
    %24 = math.tanh %23 : vector<2x64xf32>
    %25 = arith.mulf %21, %9 : vector<2x64xf32>
    %26 = arith.mulf %20, %24 : vector<2x64xf32>
    %27 = arith.addf %25, %26 : vector<2x64xf32>
    %28 = math.tanh %27 : vector<2x64xf32>
    %29 = arith.mulf %22, %28 : vector<2x64xf32>
    %cst_14 = arith.constant dense<0.000000e+00> : vector<2x256xf32>
    %30 = tpu.matmul %29, %7, %cst_14 {dimension_numbers = #tpu.dot_dimension_numbers<[1], [0], [0], [1], [0, 0, 1, 1], [], []>} : vector<2x64xf32>, vector<64x256xf32>, vector<2x256xf32> -> vector<2x256xf32>
    %31 = vector.extract_strided_slice %6 {offsets = [1, 0, 0], sizes = [1, 2, 256], strides = [1, 1, 1]} : vector<8x2x256xf32> to vector<1x2x256xf32>
    %32 = vector.shape_cast %31 : vector<1x2x256xf32> to vector<2x256xf32>
    %33 = arith.addf %30, %32 : vector<2x256xf32>
    %34 = vector.extract_strided_slice %33 {offsets = [0, 0], sizes = [2, 192], strides = [1, 1]} : vector<2x256xf32> to vector<2x192xf32>
    %35 = arith.negf %34 : vector<2x192xf32>
    %36 = math.exp %35 : vector<2x192xf32>
    %cst_15 = arith.constant 1.000000e+00 : f32
    %37 = vector.broadcast %cst_15 : f32 to vector<2x192xf32>
    %38 = arith.addf %37, %36 : vector<2x192xf32>
    %39 = arith.divf %37, %38 : vector<2x192xf32>
    %40 = vector.extract_strided_slice %39 {offsets = [0, 0], sizes = [2, 64], strides = [1, 1]} : vector<2x192xf32> to vector<2x64xf32>
    %41 = vector.extract_strided_slice %39 {offsets = [0, 64], sizes = [2, 64], strides = [1, 1]} : vector<2x192xf32> to vector<2x64xf32>
    %42 = vector.extract_strided_slice %39 {offsets = [0, 128], sizes = [2, 64], strides = [1, 1]} : vector<2x192xf32> to vector<2x64xf32>
    %43 = vector.extract_strided_slice %33 {offsets = [0, 192], sizes = [2, 64], strides = [1, 1]} : vector<2x256xf32> to vector<2x64xf32>
    %44 = math.tanh %43 : vector<2x64xf32>
    %45 = arith.mulf %41, %27 : vector<2x64xf32>
    %46 = arith.mulf %40, %44 : vector<2x64xf32>
    %47 = arith.addf %45, %46 : vector<2x64xf32>
    %48 = math.tanh %47 : vector<2x64xf32>
    %49 = arith.mulf %42, %48 : vector<2x64xf32>
    %cst_16 = arith.constant dense<0.000000e+00> : vector<2x256xf32>
    %50 = tpu.matmul %49, %7, %cst_16 {dimension_numbers = #tpu.dot_dimension_numbers<[1], [0], [0], [1], [0, 0, 1, 1], [], []>} : vector<2x64xf32>, vector<64x256xf32>, vector<2x256xf32> -> vector<2x256xf32>
    %51 = vector.extract_strided_slice %6 {offsets = [2, 0, 0], sizes = [1, 2, 256], strides = [1, 1, 1]} : vector<8x2x256xf32> to vector<1x2x256xf32>
    %52 = vector.shape_cast %51 : vector<1x2x256xf32> to vector<2x256xf32>
    %53 = arith.addf %50, %52 : vector<2x256xf32>
    %54 = vector.extract_strided_slice %53 {offsets = [0, 0], sizes = [2, 192], strides = [1, 1]} : vector<2x256xf32> to vector<2x192xf32>
    %55 = arith.negf %54 : vector<2x192xf32>
    %56 = math.exp %55 : vector<2x192xf32>
    %cst_17 = arith.constant 1.000000e+00 : f32
    %57 = vector.broadcast %cst_17 : f32 to vector<2x192xf32>
    %58 = arith.addf %57, %56 : vector<2x192xf32>
    %59 = arith.divf %57, %58 : vector<2x192xf32>
    %60 = vector.extract_strided_slice %59 {offsets = [0, 0], sizes = [2, 64], strides = [1, 1]} : vector<2x192xf32> to vector<2x64xf32>
    %61 = vector.extract_strided_slice %59 {offsets = [0, 64], sizes = [2, 64], strides = [1, 1]} : vector<2x192xf32> to vector<2x64xf32>
    %62 = vector.extract_strided_slice %59 {offsets = [0, 128], sizes = [2, 64], strides = [1, 1]} : vector<2x192xf32> to vector<2x64xf32>
    %63 = vector.extract_strided_slice %53 {offsets = [0, 192], sizes = [2, 64], strides = [1, 1]} : vector<2x256xf32> to vector<2x64xf32>
    %64 = math.tanh %63 : vector<2x64xf32>
    %65 = arith.mulf %61, %47 : vector<2x64xf32>
    %66 = arith.mulf %60, %64 : vector<2x64xf32>
    %67 = arith.addf %65, %66 : vector<2x64xf32>
    %68 = math.tanh %67 : vector<2x64xf32>
    %69 = arith.mulf %62, %68 : vector<2x64xf32>
    %cst_18 = arith.constant dense<0.000000e+00> : vector<2x256xf32>
    %70 = tpu.matmul %69, %7, %cst_18 {dimension_numbers = #tpu.dot_dimension_numbers<[1], [0], [0], [1], [0, 0, 1, 1], [], []>} : vector<2x64xf32>, vector<64x256xf32>, vector<2x256xf32> -> vector<2x256xf32>
    %71 = vector.extract_strided_slice %6 {offsets = [3, 0, 0], sizes = [1, 2, 256], strides = [1, 1, 1]} : vector<8x2x256xf32> to vector<1x2x256xf32>
    %72 = vector.shape_cast %71 : vector<1x2x256xf32> to vector<2x256xf32>
    %73 = arith.addf %70, %72 : vector<2x256xf32>
    %74 = vector.extract_strided_slice %73 {offsets = [0, 0], sizes = [2, 192], strides = [1, 1]} : vector<2x256xf32> to vector<2x192xf32>
    %75 = arith.negf %74 : vector<2x192xf32>
    %76 = math.exp %75 : vector<2x192xf32>
    %cst_19 = arith.constant 1.000000e+00 : f32
    %77 = vector.broadcast %cst_19 : f32 to vector<2x192xf32>
    %78 = arith.addf %77, %76 : vector<2x192xf32>
    %79 = arith.divf %77, %78 : vector<2x192xf32>
    %80 = vector.extract_strided_slice %79 {offsets = [0, 0], sizes = [2, 64], strides = [1, 1]} : vector<2x192xf32> to vector<2x64xf32>
    %81 = vector.extract_strided_slice %79 {offsets = [0, 64], sizes = [2, 64], strides = [1, 1]} : vector<2x192xf32> to vector<2x64xf32>
    %82 = vector.extract_strided_slice %79 {offsets = [0, 128], sizes = [2, 64], strides = [1, 1]} : vector<2x192xf32> to vector<2x64xf32>
    %83 = vector.extract_strided_slice %73 {offsets = [0, 192], sizes = [2, 64], strides = [1, 1]} : vector<2x256xf32> to vector<2x64xf32>
    %84 = math.tanh %83 : vector<2x64xf32>
    %85 = arith.mulf %81, %67 : vector<2x64xf32>
    %86 = arith.mulf %80, %84 : vector<2x64xf32>
    %87 = arith.addf %85, %86 : vector<2x64xf32>
    %88 = math.tanh %87 : vector<2x64xf32>
    %89 = arith.mulf %82, %88 : vector<2x64xf32>
    %cst_20 = arith.constant dense<0.000000e+00> : vector<2x256xf32>
    %90 = tpu.matmul %89, %7, %cst_20 {dimension_numbers = #tpu.dot_dimension_numbers<[1], [0], [0], [1], [0, 0, 1, 1], [], []>} : vector<2x64xf32>, vector<64x256xf32>, vector<2x256xf32> -> vector<2x256xf32>
    %91 = vector.extract_strided_slice %6 {offsets = [4, 0, 0], sizes = [1, 2, 256], strides = [1, 1, 1]} : vector<8x2x256xf32> to vector<1x2x256xf32>
    %92 = vector.shape_cast %91 : vector<1x2x256xf32> to vector<2x256xf32>
    %93 = arith.addf %90, %92 : vector<2x256xf32>
    %94 = vector.extract_strided_slice %93 {offsets = [0, 0], sizes = [2, 192], strides = [1, 1]} : vector<2x256xf32> to vector<2x192xf32>
    %95 = arith.negf %94 : vector<2x192xf32>
    %96 = math.exp %95 : vector<2x192xf32>
    %cst_21 = arith.constant 1.000000e+00 : f32
    %97 = vector.broadcast %cst_21 : f32 to vector<2x192xf32>
    %98 = arith.addf %97, %96 : vector<2x192xf32>
    %99 = arith.divf %97, %98 : vector<2x192xf32>
    %100 = vector.extract_strided_slice %99 {offsets = [0, 0], sizes = [2, 64], strides = [1, 1]} : vector<2x192xf32> to vector<2x64xf32>
    %101 = vector.extract_strided_slice %99 {offsets = [0, 64], sizes = [2, 64], strides = [1, 1]} : vector<2x192xf32> to vector<2x64xf32>
    %102 = vector.extract_strided_slice %99 {offsets = [0, 128], sizes = [2, 64], strides = [1, 1]} : vector<2x192xf32> to vector<2x64xf32>
    %103 = vector.extract_strided_slice %93 {offsets = [0, 192], sizes = [2, 64], strides = [1, 1]} : vector<2x256xf32> to vector<2x64xf32>
    %104 = math.tanh %103 : vector<2x64xf32>
    %105 = arith.mulf %101, %87 : vector<2x64xf32>
    %106 = arith.mulf %100, %104 : vector<2x64xf32>
    %107 = arith.addf %105, %106 : vector<2x64xf32>
    %108 = math.tanh %107 : vector<2x64xf32>
    %109 = arith.mulf %102, %108 : vector<2x64xf32>
    %cst_22 = arith.constant dense<0.000000e+00> : vector<2x256xf32>
    %110 = tpu.matmul %109, %7, %cst_22 {dimension_numbers = #tpu.dot_dimension_numbers<[1], [0], [0], [1], [0, 0, 1, 1], [], []>} : vector<2x64xf32>, vector<64x256xf32>, vector<2x256xf32> -> vector<2x256xf32>
    %111 = vector.extract_strided_slice %6 {offsets = [5, 0, 0], sizes = [1, 2, 256], strides = [1, 1, 1]} : vector<8x2x256xf32> to vector<1x2x256xf32>
    %112 = vector.shape_cast %111 : vector<1x2x256xf32> to vector<2x256xf32>
    %113 = arith.addf %110, %112 : vector<2x256xf32>
    %114 = vector.extract_strided_slice %113 {offsets = [0, 0], sizes = [2, 192], strides = [1, 1]} : vector<2x256xf32> to vector<2x192xf32>
    %115 = arith.negf %114 : vector<2x192xf32>
    %116 = math.exp %115 : vector<2x192xf32>
    %cst_23 = arith.constant 1.000000e+00 : f32
    %117 = vector.broadcast %cst_23 : f32 to vector<2x192xf32>
    %118 = arith.addf %117, %116 : vector<2x192xf32>
    %119 = arith.divf %117, %118 : vector<2x192xf32>
    %120 = vector.extract_strided_slice %119 {offsets = [0, 0], sizes = [2, 64], strides = [1, 1]} : vector<2x192xf32> to vector<2x64xf32>
    %121 = vector.extract_strided_slice %119 {offsets = [0, 64], sizes = [2, 64], strides = [1, 1]} : vector<2x192xf32> to vector<2x64xf32>
    %122 = vector.extract_strided_slice %119 {offsets = [0, 128], sizes = [2, 64], strides = [1, 1]} : vector<2x192xf32> to vector<2x64xf32>
    %123 = vector.extract_strided_slice %113 {offsets = [0, 192], sizes = [2, 64], strides = [1, 1]} : vector<2x256xf32> to vector<2x64xf32>
    %124 = math.tanh %123 : vector<2x64xf32>
    %125 = arith.mulf %121, %107 : vector<2x64xf32>
    %126 = arith.mulf %120, %124 : vector<2x64xf32>
    %127 = arith.addf %125, %126 : vector<2x64xf32>
    %128 = math.tanh %127 : vector<2x64xf32>
    %129 = arith.mulf %122, %128 : vector<2x64xf32>
    %cst_24 = arith.constant dense<0.000000e+00> : vector<2x256xf32>
    %130 = tpu.matmul %129, %7, %cst_24 {dimension_numbers = #tpu.dot_dimension_numbers<[1], [0], [0], [1], [0, 0, 1, 1], [], []>} : vector<2x64xf32>, vector<64x256xf32>, vector<2x256xf32> -> vector<2x256xf32>
    %131 = vector.extract_strided_slice %6 {offsets = [6, 0, 0], sizes = [1, 2, 256], strides = [1, 1, 1]} : vector<8x2x256xf32> to vector<1x2x256xf32>
    %132 = vector.shape_cast %131 : vector<1x2x256xf32> to vector<2x256xf32>
    %133 = arith.addf %130, %132 : vector<2x256xf32>
    %134 = vector.extract_strided_slice %133 {offsets = [0, 0], sizes = [2, 192], strides = [1, 1]} : vector<2x256xf32> to vector<2x192xf32>
    %135 = arith.negf %134 : vector<2x192xf32>
    %136 = math.exp %135 : vector<2x192xf32>
    %cst_25 = arith.constant 1.000000e+00 : f32
    %137 = vector.broadcast %cst_25 : f32 to vector<2x192xf32>
    %138 = arith.addf %137, %136 : vector<2x192xf32>
    %139 = arith.divf %137, %138 : vector<2x192xf32>
    %140 = vector.extract_strided_slice %139 {offsets = [0, 0], sizes = [2, 64], strides = [1, 1]} : vector<2x192xf32> to vector<2x64xf32>
    %141 = vector.extract_strided_slice %139 {offsets = [0, 64], sizes = [2, 64], strides = [1, 1]} : vector<2x192xf32> to vector<2x64xf32>
    %142 = vector.extract_strided_slice %139 {offsets = [0, 128], sizes = [2, 64], strides = [1, 1]} : vector<2x192xf32> to vector<2x64xf32>
    %143 = vector.extract_strided_slice %133 {offsets = [0, 192], sizes = [2, 64], strides = [1, 1]} : vector<2x256xf32> to vector<2x64xf32>
    %144 = math.tanh %143 : vector<2x64xf32>
    %145 = arith.mulf %141, %127 : vector<2x64xf32>
    %146 = arith.mulf %140, %144 : vector<2x64xf32>
    %147 = arith.addf %145, %146 : vector<2x64xf32>
    %148 = math.tanh %147 : vector<2x64xf32>
    %149 = arith.mulf %142, %148 : vector<2x64xf32>
    %cst_26 = arith.constant dense<0.000000e+00> : vector<2x256xf32>
    %150 = tpu.matmul %149, %7, %cst_26 {dimension_numbers = #tpu.dot_dimension_numbers<[1], [0], [0], [1], [0, 0, 1, 1], [], []>} : vector<2x64xf32>, vector<64x256xf32>, vector<2x256xf32> -> vector<2x256xf32>
    %151 = vector.extract_strided_slice %6 {offsets = [7, 0, 0], sizes = [1, 2, 256], strides = [1, 1, 1]} : vector<8x2x256xf32> to vector<1x2x256xf32>
    %152 = vector.shape_cast %151 : vector<1x2x256xf32> to vector<2x256xf32>
    %153 = arith.addf %150, %152 : vector<2x256xf32>
    %154 = vector.extract_strided_slice %153 {offsets = [0, 0], sizes = [2, 192], strides = [1, 1]} : vector<2x256xf32> to vector<2x192xf32>
    %155 = arith.negf %154 : vector<2x192xf32>
    %156 = math.exp %155 : vector<2x192xf32>
    %cst_27 = arith.constant 1.000000e+00 : f32
    %157 = vector.broadcast %cst_27 : f32 to vector<2x192xf32>
    %158 = arith.addf %157, %156 : vector<2x192xf32>
    %159 = arith.divf %157, %158 : vector<2x192xf32>
    %160 = vector.extract_strided_slice %159 {offsets = [0, 0], sizes = [2, 64], strides = [1, 1]} : vector<2x192xf32> to vector<2x64xf32>
    %161 = vector.extract_strided_slice %159 {offsets = [0, 64], sizes = [2, 64], strides = [1, 1]} : vector<2x192xf32> to vector<2x64xf32>
    %162 = vector.extract_strided_slice %159 {offsets = [0, 128], sizes = [2, 64], strides = [1, 1]} : vector<2x192xf32> to vector<2x64xf32>
    %163 = vector.extract_strided_slice %153 {offsets = [0, 192], sizes = [2, 64], strides = [1, 1]} : vector<2x256xf32> to vector<2x64xf32>
    %164 = math.tanh %163 : vector<2x64xf32>
    %165 = arith.mulf %161, %147 : vector<2x64xf32>
    %166 = arith.mulf %160, %164 : vector<2x64xf32>
    %167 = arith.addf %165, %166 : vector<2x64xf32>
    %168 = math.tanh %167 : vector<2x64xf32>
    %169 = arith.mulf %162, %168 : vector<2x64xf32>
    %170 = tpu.concatenate %29, %49, %69, %89, %109, %129, %149, %169 in 0 : vector<2x64xf32>, vector<2x64xf32>, vector<2x64xf32>, vector<2x64xf32>, vector<2x64xf32>, vector<2x64xf32>, vector<2x64xf32>, vector<2x64xf32> -> vector<16x64xf32>
    %c0_28 = arith.constant 0 : index
    %c0_29 = arith.constant 0 : index
    %171 = vector.load %arg6[%c0_28, %c0_29] : memref<64x4xf32, #tpu.memory_space<vmem>>, vector<64x4xf32>
    %cst_30 = arith.constant dense<0.000000e+00> : vector<16x4xf32>
    %172 = tpu.matmul %170, %171, %cst_30 {dimension_numbers = #tpu.dot_dimension_numbers<[1], [0], [0], [1], [0, 0, 1, 1], [], []>} : vector<16x64xf32>, vector<64x4xf32>, vector<16x4xf32> -> vector<16x4xf32>
    %c0_31 = arith.constant 0 : index
    %c0_32 = arith.constant 0 : index
    %173 = vector.load %arg7[%c0_31, %c0_32] : memref<1x4xf32, #tpu.memory_space<vmem>>, vector<1x4xf32>
    %174 = vector.broadcast %173 : vector<1x4xf32> to vector<16x4xf32>
    %175 = arith.addf %172, %174 : vector<16x4xf32>
    %176 = vector.extract_strided_slice %175 {offsets = [0, 0], sizes = [16, 2], strides = [1, 1]} : vector<16x4xf32> to vector<16x2xf32>
    %177 = vector.extract_strided_slice %176 {offsets = [0, 0], sizes = [16, 1], strides = [1, 1]} : vector<16x2xf32> to vector<16x1xf32>
    %178 = vector.extract_strided_slice %176 {offsets = [0, 1], sizes = [16, 1], strides = [1, 1]} : vector<16x2xf32> to vector<16x1xf32>
    %179 = arith.maximumf %177, %178 : vector<16x1xf32>
    %180 = vector.extract_strided_slice %176 {offsets = [0, 0], sizes = [16, 1], strides = [1, 1]} : vector<16x2xf32> to vector<16x1xf32>
    %181 = arith.subf %180, %179 : vector<16x1xf32>
    %182 = math.exp %181 : vector<16x1xf32>
    %183 = vector.extract_strided_slice %176 {offsets = [0, 1], sizes = [16, 1], strides = [1, 1]} : vector<16x2xf32> to vector<16x1xf32>
    %184 = arith.subf %183, %179 : vector<16x1xf32>
    %185 = math.exp %184 : vector<16x1xf32>
    %186 = arith.addf %182, %185 : vector<16x1xf32>
    %187 = math.log %186 : vector<16x1xf32>
    %188 = arith.addf %179, %187 : vector<16x1xf32>
    %189 = vector.broadcast %188 : vector<16x1xf32> to vector<16x2xf32>
    %190 = arith.subf %176, %189 : vector<16x2xf32>
    %191 = vector.extract_strided_slice %175 {offsets = [0, 2], sizes = [16, 2], strides = [1, 1]} : vector<16x4xf32> to vector<16x2xf32>
    %192 = vector.extract_strided_slice %191 {offsets = [0, 0], sizes = [16, 1], strides = [1, 1]} : vector<16x2xf32> to vector<16x1xf32>
    %193 = vector.extract_strided_slice %191 {offsets = [0, 1], sizes = [16, 1], strides = [1, 1]} : vector<16x2xf32> to vector<16x1xf32>
    %194 = arith.maximumf %192, %193 : vector<16x1xf32>
    %195 = vector.extract_strided_slice %191 {offsets = [0, 0], sizes = [16, 1], strides = [1, 1]} : vector<16x2xf32> to vector<16x1xf32>
    %196 = arith.subf %195, %194 : vector<16x1xf32>
    %197 = math.exp %196 : vector<16x1xf32>
    %198 = vector.extract_strided_slice %191 {offsets = [0, 1], sizes = [16, 1], strides = [1, 1]} : vector<16x2xf32> to vector<16x1xf32>
    %199 = arith.subf %198, %194 : vector<16x1xf32>
    %200 = math.exp %199 : vector<16x1xf32>
    %201 = arith.addf %197, %200 : vector<16x1xf32>
    %202 = math.log %201 : vector<16x1xf32>
    %203 = arith.addf %194, %202 : vector<16x1xf32>
    %204 = vector.broadcast %203 : vector<16x1xf32> to vector<16x2xf32>
    %205 = arith.subf %191, %204 : vector<16x2xf32>
    %206 = tpu.concatenate %190, %205 in 1 : vector<16x2xf32>, vector<16x2xf32> -> vector<16x4xf32>
    %c0_33 = arith.constant 0 : index
    %c0_34 = arith.constant 0 : index
    %207 = vector.load %arg8[%c0_33, %c0_34] : memref<16x4xf32, #tpu.memory_space<vmem>>, vector<16x4xf32>
    tpu.vector_store %arg8[%c0_33, %c0_34], %206 {strides = array<i32>} : memref<16x4xf32, #tpu.memory_space<vmem>>, vector<16x4xf32>,
    return
  }
}

</mosaic_0001>

<llo_original>
// kernel: librosa_features_rnn_forward.1
$region0: #{librosa_features_rnn_forward.1}
  #allocation0 [shape = 'u32[]', space=smem, size = 0x4, offset = 0x4, fixed_abs, tag = 'smem constant byte address 0x4 - core index']
  #allocation1 [shape = 'u32[144,128]{1,0:T(1,128)}', space=vmem, size = 0x12000, scoped, tag = 'internal scratch']
  %s0 = inlined_call_operand.vmem [shape: f32[8,2,32], index: 0, kind: input, shape index: {}]
  %s1 = inlined_call_operand.vmem [shape: f32[32,256], index: 1, kind: input, shape index: {}]
  %s2 = inlined_call_operand.vmem [shape: f32[64,256], index: 2, kind: input, shape index: {}]
  %s3 = inlined_call_operand.vmem [shape: f32[1,256], index: 3, kind: input, shape index: {}]
  %s4 = inlined_call_operand.vmem [shape: f32[2,64], index: 4, kind: input, shape index: {}]
  %s5 = inlined_call_operand.vmem [shape: f32[2,64], index: 5, kind: input, shape index: {}]
  %s6 = inlined_call_operand.vmem [shape: f32[64,4], index: 6, kind: input, shape index: {}]
  %s7 = inlined_call_operand.vmem [shape: f32[1,4], index: 7, kind: input, shape index: {}]
  %s8 = inlined_call_operand.vmem [shape: f32[16,4], index: 8, kind: output, shape index: {}]
  %s9 = sld [smem:[#allocation0]]
  $region42: #{librosa_features_rnn_forward.1} parent=0
    _
  %s11 = ssub.s32 1, %s9
  %s12 = scalar_select 0, %s11, %s9
  // Predicated region
  $region2: #{librosa_features_rnn_forward.1} parent=0 // pred_check
    _
  $region3: #{librosa_features_rnn_forward.1} parent=0 // pred_check_branch
    %14 = sbr.rel (0) target = $region5
  $region4: #{librosa_features_rnn_forward.1} parent=0 // pred_region
    _
  $region5: #{librosa_features_rnn_forward.1} parent=0 // pred_fallthru
    _
  // Predicated region
  $region6: #{librosa_features_rnn_forward.1} parent=0 // pred_check
    _
  $region7: #{librosa_features_rnn_forward.1} parent=0 // pred_check_branch
    %16 = sbr.rel (0) target = $region9
  $region8: #{librosa_features_rnn_forward.1} parent=0 // pred_region
    _
  $region9: #{librosa_features_rnn_forward.1} parent=0 // pred_fallthru
    _
  // Predicated region
  $region10: #{librosa_features_rnn_forward.1} parent=0 // pred_check
    _
  $region11: #{librosa_features_rnn_forward.1} parent=0 // pred_check_branch
    %18 = sbr.rel (0) target = $region13
  $region12: #{librosa_features_rnn_forward.1} parent=0 // pred_region
    _
  $region13: #{librosa_features_rnn_forward.1} parent=0 // pred_fallthru
    _
  // Predicated region
  $region14: #{librosa_features_rnn_forward.1} parent=0 // pred_check
    _
  $region15: #{librosa_features_rnn_forward.1} parent=0 // pred_check_branch
    %20 = sbr.rel (0) target = $region17
  $region16: #{librosa_features_rnn_forward.1} parent=0 // pred_region
    _
  $region17: #{librosa_features_rnn_forward.1} parent=0 // pred_fallthru
    _
  // Predicated region
  $region18: #{librosa_features_rnn_forward.1} parent=0 // pred_check
    _
  $region19: #{librosa_features_rnn_forward.1} parent=0 // pred_check_branch
    %22 = sbr.rel (0) target = $region21
  $region20: #{librosa_features_rnn_forward.1} parent=0 // pred_region
    _
  $region21: #{librosa_features_rnn_forward.1} parent=0 // pred_fallthru
    _
  // Predicated region
  $region22: #{librosa_features_rnn_forward.1} parent=0 // pred_check
    _
  $region23: #{librosa_features_rnn_forward.1} parent=0 // pred_check_branch
    %24 = sbr.rel (0) target = $region25
  $region24: #{librosa_features_rnn_forward.1} parent=0 // pred_region
    _
  $region25: #{librosa_features_rnn_forward.1} parent=0 // pred_fallthru
    _
  // Predicated region
  $region26: #{librosa_features_rnn_forward.1} parent=0 // pred_check
    _
  $region27: #{librosa_features_rnn_forward.1} parent=0 // pred_check_branch
    %26 = sbr.rel (0) target = $region29
  $region28: #{librosa_features_rnn_forward.1} parent=0 // pred_region
    _
  $region29: #{librosa_features_rnn_forward.1} parent=0 // pred_fallthru
    _
  // Predicated region
  $region30: #{librosa_features_rnn_forward.1} parent=0 // pred_check
    _
  $region31: #{librosa_features_rnn_forward.1} parent=0 // pred_check_branch
    %28 = sbr.rel (0) target = $region33
  $region32: #{librosa_features_rnn_forward.1} parent=0 // pred_region
    _
  $region33: #{librosa_features_rnn_forward.1} parent=0 // pred_fallthru
    _
  %v29 = vld [vmem:[%s0] sm:$0x3]
  %v30 = vld [vmem:[%s0 + $0x2] sm:$0x3]
  %v31 = vld [vmem:[%s0 + $0x4] sm:$0x3]
  %v32 = vld [vmem:[%s0 + $0x6] sm:$0x3]
  %v33 = vld [vmem:[%s0 + $0x8] sm:$0x3]
  %v34 = vld [vmem:[%s0 + $0xa] sm:$0x3]
  %v35 = vld [vmem:[%s0 + $0xc] sm:$0x3]
  %v36 = vld [vmem:[%s0 + $0xe] sm:$0x3]
  %v37 = vld [vmem:[%s1] sm:$0xff]
  %v38 = vld [vmem:[%s1 + $0x8] sm:$0xff]
  %v39 = vld [vmem:[%s1 + $0x10] sm:$0xff]
  %v40 = vld [vmem:[%s1 + $0x18] sm:$0xff]
  %v41 = vld [vmem:[%s1 + $0x20] sm:$0xff]
  %v42 = vld [vmem:[%s1 + $0x28] sm:$0xff]
  %v43 = vld [vmem:[%s1 + $0x30] sm:$0xff]
  %v44 = vld [vmem:[%s1 + $0x38] sm:$0xff]
  %v45 = vld [vmem:[%s3] sm:$0x3]
  %v47 = vlaneseq
  %v48 = vshrl.u32 %v47, 7
  %v49 = vsub.s32 0, %v48
  %v50 = vrot.slane %v45, %v49
  %v51 = vlaneseq
  %v52 = vshrl.u32 %v51, 7
  %v53 = vsub.s32 1, %v52
  %v54 = vrot.slane %v45, %v53
  %v55 = vcombine.low %v50, %v54
  %v57 = vunpack.c.l.s4 1983009808
  %v58 = vunpack.c.0.s8 %v57
  %v59 = vlaneseq
  %v60 = vshrl.u32 %v59, 7
  %v61 = vsub.s32 %v58, %v60
  %v62 = vrot.slane %v55, %v61
  %v71 = vcombine.low %v29, %v30
  %v72 = vcombine.low %v31, %v32
  %v74 = vunpack.c.l.s4 1983009808
  %v75 = vunpack.c.0.s8 %v74
  %v76 = vlaneseq
  %v77 = vshrl.u32 %v76, 7
  %v78 = vsub.s32 %v75, %v77
  %v79 = vrot.slane %v71, %v78
  %v81 = vunpack.c.l.s4 1983009808
  %v82 = vunpack.c.0.s8 %v81
  %v83 = vlaneseq
  %v84 = vshrl.u32 %v83, 7
  %v85 = vsub.s32 %v82, %v84
  %v86 = vrot.slane %v72, %v85
  %v87 = vcombine.low %v79, %v86
  %v88 = vcombine.low %v33, %v34
  %v89 = vcombine.low %v35, %v36
  %v91 = vunpack.c.l.s4 1983009808
  %v92 = vunpack.c.0.s8 %v91
  %v93 = vlaneseq
  %v94 = vshrl.u32 %v93, 7
  %v95 = vsub.s32 %v92, %v94
  %v96 = vrot.slane %v88, %v95
  %v98 = vunpack.c.l.s4 1983009808
  %v99 = vunpack.c.0.s8 %v98
  %v100 = vlaneseq
  %v101 = vshrl.u32 %v100, 7
  %v102 = vsub.s32 %v99, %v101
  %v103 = vrot.slane %v89, %v102
  %v104 = vcombine.low %v96, %v103
  %v105 = vcombine.low %v62, %v62
  %v107 = vunpack.c.l.s4 1983009808
  %v108 = vunpack.c.0.s8 %v107
  %v109 = vlaneseq
  %v110 = vshrl.u32 %v109, 7
  %v111 = vsub.s32 %v108, %v110
  %v112 = vrot.slane %v105, %v111
  %v113 = vcombine.low %v112, %v112
  %v114 = vcombine.high %v112, %v112
  %vm117 = vcmask 261120
  %v118 = vsel %vm117, %v87, 0
  %v120 = vsel %vm117, %v104, 0
  %122 = vmatprep.subr.mxu0 %v38
  %123 = vmatpush1.msra.mxu0 %v37
  %124 = vmatprep.subr.mxu0 %v40
  %125 = vmatpush1.msra.mxu0 %v39
  %126 = vmatprep.subr.mxu0 %v42
  %127 = vmatpush1.msra.mxu0 %v41
  %128 = vmatprep.subr.mxu0 %v44
  %129 = vmatpush1.msra.mxu0 %v43
  %130 = vmatprep.subr.mxu0 0.0
  %131 = vmatpush1.msra.mxu0 0.0
  %132 = vmatprep.subr.mxu0 0.0
  %133 = vmatpush1.msra.mxu0 0.0
  %134 = vmatprep.subr.mxu0 0.0
  %135 = vmatpush1.msra.mxu0 0.0
  %136 = vmatprep.subr.mxu0 0.0
  %137 = vmatpush1.msra.mxu0 0.0
  %138 = vmatprep.subr.mxu0 0.0
  %139 = vmatpush1.msra.mxu0 0.0
  %140 = vmatprep.subr.mxu0 0.0
  %141 = vmatpush1.msra.mxu0 0.0
  %142 = vmatprep.subr.mxu0 0.0
  %143 = vmatpush1.msra.mxu0 0.0
  %144 = vmatprep.subr.mxu0 0.0
  %145 = vmatpush1.msra.mxu0 0.0
  %146 = vmatprep.subr.mxu0 0.0
  %147 = vmatpush1.msra.mxu0 0.0
  %148 = vmatprep.subr.mxu0 0.0
  %149 = vmatpush1.msra.mxu0 0.0
  %150 = vmatprep.subr.mxu0 0.0
  %151 = vmatpush1.msra.mxu0 0.0
  %152 = vmatprep.subr.mxu0 0.0
  %153 = vmatpush1.msra.mxu0 0.0
  %154 = vmatprep.subr.mxu0 0.0
  %155 = vmatpush1.msra.mxu0 0.0
  %156 = vmatprep.subr.mxu0 0.0
  %157 = vmatpush1.msra.mxu0 0.0
  %158 = vmatprep.subr.mxu0 0.0
  %159 = vmatpush1.msra.mxu0 0.0
  %160 = vmatprep.subr.mxu0 0.0
  %161 = vmatpush1.msra.mxu0 0.0
  %162 = vmatprep.subr.mxu0 0.0
  %163 = vmatpush1.msra.mxu0 0.0
  %164 = vmatprep.subr.mxu0 0.0
  %165 = vmatpush1.msra.mxu0 0.0
  %166 = vmatprep.subr.mxu0 0.0
  %167 = vmatpush1.msra.mxu0 0.0
  %168 = vmatprep.subr.mxu0 0.0
  %169 = vmatpush1.msra.mxu0 0.0
  %170 = vmatprep.subr.mxu0 0.0
  %171 = vmatpush1.msra.mxu0 0.0
  %172 = vmatprep.subr.mxu0 0.0
  %173 = vmatpush1.msra.mxu0 0.0
  %174 = vmatprep.subr.mxu0 0.0
  %175 = vmatpush1.msra.mxu0 0.0
  %176 = vmatprep.subr.mxu0 0.0
  %177 = vmatpush1.msra.mxu0 0.0
  %178 = vmatprep.subr.mxu0 0.0
  %179 = vmatpush1.msra.mxu0 0.0
  %180 = vmatprep.subr.mxu0 0.0
  %181 = vmatpush1.msra.mxu0 0.0
  %182 = vmatprep.subr.mxu0 0.0
  %183 = vmatpush1.msra.mxu0 0.0
  %184 = vmatprep.subr.mxu0 0.0
  %185 = vmatpush1.msra.mxu0 0.0
  %186 = vmatprep.mubr.f32.mxu0 0.0
  %187 = vmatmul.mubr.f32.gmra.mrb[0].mxu0 %v118
  %v188 = vpop.f32.mrb[0].mxu0
  %v189 = vadd.f32 %v113, %v188
  %v190 = vpop.f32.mrb[0].mxu0
  %v191 = vadd.f32 %v114, %v190
  %192 = vmatprep.mubr.f32.mxu0 0.0
  %193 = vmatmul.mubr.f32.gmra.mrb[0].mxu0 %v120
  %v194 = vpop.f32.mrb[0].mxu0
  %v195 = vadd.f32 %v113, %v194
  %v196 = vpop.f32.mrb[0].mxu0
  %v197 = vadd.f32 %v114, %v196
  %198 = vdwg.mxu0
  %v203 = vcombine.low %v189, %v191
  %v204 = vcombine.high %v189, %v191
  %v206 = vunpack.c.l.s4 1983009808
  %v207 = vunpack.c.0.s8 %v206
  %v208 = vlaneseq
  %v209 = vshrl.u32 %v208, 7
  %v210 = vsub.s32 %v207, %v209
  %v211 = vrot.slane %v203, %v210
  %v213 = vunpack.c.l.s4 1983009808
  %v214 = vunpack.c.0.s8 %v213
  %v215 = vlaneseq
  %v216 = vshrl.u32 %v215, 7
  %v217 = vsub.s32 %v214, %v216
  %v218 = vrot.slane %v204, %v217
  %v219 = vcombine.high %v211, %v211
  %v220 = vcombine.high %v218, %v218
  %v221 = vcombine.low %v195, %v197
  %v222 = vcombine.high %v195, %v197
  %v224 = vunpack.c.l.s4 1983009808
  %v225 = vunpack.c.0.s8 %v224
  %v226 = vlaneseq
  %v227 = vshrl.u32 %v226, 7
  %v228 = vsub.s32 %v225, %v227
  %v229 = vrot.slane %v221, %v228
  %v231 = vunpack.c.l.s4 1983009808
  %v232 = vunpack.c.0.s8 %v231
  %v233 = vlaneseq
  %v234 = vshrl.u32 %v233, 7
  %v235 = vsub.s32 %v232, %v234
  %v236 = vrot.slane %v222, %v235
  %v237 = vcombine.high %v229, %v229
  %v238 = vcombine.high %v236, %v236
  %v239 = vld [vmem:[%s2] sm:$0xff]
  %v240 = vld [vmem:[%s2 + $0x8] sm:$0xff]
  %v241 = vld [vmem:[%s2 + $0x10] sm:$0xff]
  %v242 = vld [vmem:[%s2 + $0x18] sm:$0xff]
  %v243 = vld [vmem:[%s2 + $0x20] sm:$0xff]
  %v244 = vld [vmem:[%s2 + $0x28] sm:$0xff]
  %v245 = vld [vmem:[%s2 + $0x30] sm:$0xff]
  %v246 = vld [vmem:[%s2 + $0x38] sm:$0xff]
  %v247 = vld [vmem:[%s2 + $0x40] sm:$0xff]
  %v248 = vld [vmem:[%s2 + $0x48] sm:$0xff]
  %v249 = vld [vmem:[%s2 + $0x50] sm:$0xff]
  %v250 = vld [vmem:[%s2 + $0x58] sm:$0xff]
  %v251 = vld [vmem:[%s2 + $0x60] sm:$0xff]
  %v252 = vld [vmem:[%s2 + $0x68] sm:$0xff]
  %v253 = vld [vmem:[%s2 + $0x70] sm:$0xff]
  %v254 = vld [vmem:[%s2 + $0x78] sm:$0xff]
  %v255 = vld [vmem:[%s4] sm:$0x3]
  %v256 = vld [vmem:[%s5] sm:$0x3]
  %v258 = vunpack.c.l.s4 1983009808
  %v259 = vunpack.c.0.s8 %v258
  %v260 = vlaneseq
  %v261 = vshrl.u32 %v260, 7
  %v262 = vsub.s32 %v259, %v261
  %v263 = vrot.slane %v211, %v262
  %v264 = vcombine.high %v263, %v263
  %vm267 = vcmask 523264
  %v269 = vsel %vm267, %v255, 0
  %271 = vmatprep.subr.mxu0 %v240
  %272 = vmatpush1.msra.mxu0 %v239
  %273 = vmatprep.subr.mxu0 %v242
  %274 = vmatpush1.msra.mxu0 %v241
  %275 = vmatprep.subr.mxu0 %v244
  %276 = vmatpush1.msra.mxu0 %v243
  %277 = vmatprep.subr.mxu0 %v246
  %278 = vmatpush1.msra.mxu0 %v245
  %279 = vmatprep.subr.mxu0 %v248
  %280 = vmatpush1.msra.mxu0 %v247
  %281 = vmatprep.subr.mxu0 %v250
  %282 = vmatpush1.msra.mxu0 %v249
  %283 = vmatprep.subr.mxu0 %v252
  %284 = vmatpush1.msra.mxu0 %v251
  %285 = vmatprep.subr.mxu0 %v254
  %286 = vmatpush1.msra.mxu0 %v253
  %287 = vmatprep.subr.mxu0 0.0
  %288 = vmatpush1.msra.mxu0 0.0
  %289 = vmatprep.subr.mxu0 0.0
  %290 = vmatpush1.msra.mxu0 0.0
  %291 = vmatprep.subr.mxu0 0.0
  %292 = vmatpush1.msra.mxu0 0.0
  %293 = vmatprep.subr.mxu0 0.0
  %294 = vmatpush1.msra.mxu0 0.0
  %295 = vmatprep.subr.mxu0 0.0
  %296 = vmatpush1.msra.mxu0 0.0
  %297 = vmatprep.subr.mxu0 0.0
  %298 = vmatpush1.msra.mxu0 0.0
  %299 = vmatprep.subr.mxu0 0.0
  %300 = vmatpush1.msra.mxu0 0.0
  %301 = vmatprep.subr.mxu0 0.0
  %302 = vmatpush1.msra.mxu0 0.0
  %303 = vmatprep.subr.mxu0 0.0
  %304 = vmatpush1.msra.mxu0 0.0
  %305 = vmatprep.subr.mxu0 0.0
  %306 = vmatpush1.msra.mxu0 0.0
  %307 = vmatprep.subr.mxu0 0.0
  %308 = vmatpush1.msra.mxu0 0.0
  %309 = vmatprep.subr.mxu0 0.0
  %310 = vmatpush1.msra.mxu0 0.0
  %311 = vmatprep.subr.mxu0 0.0
  %312 = vmatpush1.msra.mxu0 0.0
  %313 = vmatprep.subr.mxu0 0.0
  %314 = vmatpush1.msra.mxu0 0.0
  %315 = vmatprep.subr.mxu0 0.0
  %316 = vmatpush1.msra.mxu0 0.0
  %317 = vmatprep.subr.mxu0 0.0
  %318 = vmatpush1.msra.mxu0 0.0
  %319 = vmatprep.subr.mxu0 0.0
  %320 = vmatpush1.msra.mxu0 0.0
  %321 = vmatprep.subr.mxu0 0.0
  %322 = vmatpush1.msra.mxu0 0.0
  %323 = vmatprep.subr.mxu0 0.0
  %324 = vmatpush1.msra.mxu0 0.0
  %325 = vmatprep.subr.mxu0 0.0
  %326 = vmatpush1.msra.mxu0 0.0
  %327 = vmatprep.subr.mxu0 0.0
  %328 = vmatpush1.msra.mxu0 0.0
  %329 = vmatprep.subr.mxu0 0.0
  %330 = vmatpush1.msra.mxu0 0.0
  %331 = vmatprep.subr.mxu0 0.0
  %332 = vmatpush1.msra.mxu0 0.0
  %333 = vmatprep.subr.mxu0 0.0
  %334 = vmatpush1.msra.mxu0 0.0
  %335 = vmatprep.mubr.f32.mxu0 0.0
  %336 = vmatmul.mubr.f32.gmra.mrb[0].mxu0 %v269
  %v337 = vpop.f32.mrb[0].mxu0
  %v338 = vadd.f32 %v263, %v337
  %v339 = vpop.f32.mrb[0].mxu0
  %v340 = vadd.f32 %v264, %v339
  %341 = vdwg.mxu0
  %v342 = vxor.u32 %v338, 2147483648
  %v343 = vxor.u32 %v340, 2147483648
  %v344 = vmul.f32 %v342, 1.442695
  %v345 = vpow.pop %v344
  %v346 = vmul.f32 %v343, 1.442695
  %v347 = vpow.pop %v346
  %v348 = vadd.f32 %v345, 1.0
  %v349 = vadd.f32 %v347, 1.0
  %v350 = vrcp.pop %v348
  %v351 = vmul.f32 1.0, %v350
  %v352 = vrcp.pop %v349
  %v353 = vmul.f32 1.0, %v352
  %v354 = vtanh.pop %v340
  %356 = vrot.lane.b32.xlu0 %v256, 64
  %v357 = vpop.permute.xlu0 %356
  %v359 = vmul.f32 %v351, %v357
  %361 = vrot.lane.b32.xlu0 %v354, 64
  %v362 = vpop.permute.xlu0 %361
  %v364 = vmul.f32 %v351, %v362
  %366 = vrot.lane.b32.xlu0 %v364, 64
  %v367 = vpop.permute.xlu0 %366
  %v369 = vadd.f32 %v359, %v367
  %v370 = vtanh.pop %v369
  %372 = vrot.lane.b32.xlu0 %v370, 64
  %v373 = vpop.permute.xlu0 %372
  %v375 = vmul.f32 %v353, %v373
  %v377 = vunpack.c.l.s4 1983009808
  %v378 = vunpack.c.0.s8 %v377
  %v379 = vlaneseq
  %v380 = vshrl.u32 %v379, 7
  %v381 = vsub.s32 %v378, %v380
  %v382 = vrot.slane %v219, %v381
  %v383 = vcombine.high %v382, %v382
  %v387 = vsel %vm267, %v375, 0
  %389 = vmatprep.subr.mxu0 %v240
  %390 = vmatpush1.msra.mxu0 %v239
  %391 = vmatprep.subr.mxu0 %v242
  %392 = vmatpush1.msra.mxu0 %v241
  %393 = vmatprep.subr.mxu0 %v244
  %394 = vmatpush1.msra.mxu0 %v243
  %395 = vmatprep.subr.mxu0 %v246
  %396 = vmatpush1.msra.mxu0 %v245
  %397 = vmatprep.subr.mxu0 %v248
  %398 = vmatpush1.msra.mxu0 %v247
  %399 = vmatprep.subr.mxu0 %v250
  %400 = vmatpush1.msra.mxu0 %v249
  %401 = vmatprep.subr.mxu0 %v252
  %402 = vmatpush1.msra.mxu0 %v251
  %403 = vmatprep.subr.mxu0 %v254
  %404 = vmatpush1.msra.mxu0 %v253
  %405 = vmatprep.subr.mxu0 0.0
  %406 = vmatpush1.msra.mxu0 0.0
  %407 = vmatprep.subr.mxu0 0.0
  %408 = vmatpush1.msra.mxu0 0.0
  %409 = vmatprep.subr.mxu0 0.0
  %410 = vmatpush1.msra.mxu0 0.0
  %411 = vmatprep.subr.mxu0 0.0
  %412 = vmatpush1.msra.mxu0 0.0
  %413 = vmatprep.subr.mxu0 0.0
  %414 = vmatpush1.msra.mxu0 0.0
  %415 = vmatprep.subr.mxu0 0.0
  %416 = vmatpush1.msra.mxu0 0.0
  %417 = vmatprep.subr.mxu0 0.0
  %418 = vmatpush1.msra.mxu0 0.0
  %419 = vmatprep.subr.mxu0 0.0
  %420 = vmatpush1.msra.mxu0 0.0
  %421 = vmatprep.subr.mxu0 0.0
  %422 = vmatpush1.msra.mxu0 0.0
  %423 = vmatprep.subr.mxu0 0.0
  %424 = vmatpush1.msra.mxu0 0.0
  %425 = vmatprep.subr.mxu0 0.0
  %426 = vmatpush1.msra.mxu0 0.0
  %427 = vmatprep.subr.mxu0 0.0
  %428 = vmatpush1.msra.mxu0 0.0
  %429 = vmatprep.subr.mxu0 0.0
  %430 = vmatpush1.msra.mxu0 0.0
  %431 = vmatprep.subr.mxu0 0.0
  %432 = vmatpush1.msra.mxu0 0.0
  %433 = vmatprep.subr.mxu0 0.0
  %434 = vmatpush1.msra.mxu0 0.0
  %435 = vmatprep.subr.mxu0 0.0
  %436 = vmatpush1.msra.mxu0 0.0
  %437 = vmatprep.subr.mxu0 0.0
  %438 = vmatpush1.msra.mxu0 0.0
  %439 = vmatprep.subr.mxu0 0.0
  %440 = vmatpush1.msra.mxu0 0.0
  %441 = vmatprep.subr.mxu0 0.0
  %442 = vmatpush1.msra.mxu0 0.0
  %443 = vmatprep.subr.mxu0 0.0
  %444 = vmatpush1.msra.mxu0 0.0
  %445 = vmatprep.subr.mxu0 0.0
  %446 = vmatpush1.msra.mxu0 0.0
  %447 = vmatprep.subr.mxu0 0.0
  %448 = vmatpush1.msra.mxu0 0.0
  %449 = vmatprep.subr.mxu0 0.0
  %450 = vmatpush1.msra.mxu0 0.0
  %451 = vmatprep.subr.mxu0 0.0
  %452 = vmatpush1.msra.mxu0 0.0
  %453 = vmatprep.mubr.f32.mxu0 0.0
  %454 = vmatmul.mubr.f32.gmra.mrb[0].mxu0 %v387
  %v455 = vpop.f32.mrb[0].mxu0
  %v456 = vadd.f32 %v382, %v455
  %v457 = vpop.f32.mrb[0].mxu0
  %v458 = vadd.f32 %v383, %v457
  %459 = vdwg.mxu0
  %v460 = vxor.u32 %v456, 2147483648
  %v461 = vxor.u32 %v458, 2147483648
  %v462 = vmul.f32 %v460, 1.442695
  %v463 = vpow.pop %v462
  %v464 = vmul.f32 %v461, 1.442695
  %v465 = vpow.pop %v464
  %v466 = vadd.f32 %v463, 1.0
  %v467 = vadd.f32 %v465, 1.0
  %v468 = vrcp.pop %v466
  %v469 = vmul.f32 1.0, %v468
  %v470 = vrcp.pop %v467
  %v471 = vmul.f32 1.0, %v470
  %v472 = vtanh.pop %v458
  %v473 = vmul.f32 %v469, %v369
  %475 = vrot.lane.b32.xlu0 %v472, 64
  %v476 = vpop.permute.xlu0 %475
  %v478 = vmul.f32 %v469, %v476
  %480 = vrot.lane.b32.xlu0 %v478, 64
  %v481 = vpop.permute.xlu0 %480
  %v483 = vadd.f32 %v473, %v481
  %v484 = vtanh.pop %v483
  %486 = vrot.lane.b32.xlu0 %v484, 64
  %v487 = vpop.permute.xlu0 %486
  %v489 = vmul.f32 %v471, %v487
  %v491 = vunpack.c.l.s4 1983009808
  %v492 = vunpack.c.0.s8 %v491
  %v493 = vlaneseq
  %v494 = vshrl.u32 %v493, 7
  %v495 = vsub.s32 %v492, %v494
  %v496 = vrot.slane %v218, %v495
  %v497 = vcombine.high %v496, %v496
  %v501 = vsel %vm267, %v489, 0
  %503 = vmatprep.subr.mxu0 %v240
  %504 = vmatpush1.msra.mxu0 %v239
  %505 = vmatprep.subr.mxu0 %v242
  %506 = vmatpush1.msra.mxu0 %v241
  %507 = vmatprep.subr.mxu0 %v244
  %508 = vmatpush1.msra.mxu0 %v243
  %509 = vmatprep.subr.mxu0 %v246
  %510 = vmatpush1.msra.mxu0 %v245
  %511 = vmatprep.subr.mxu0 %v248
  %512 = vmatpush1.msra.mxu0 %v247
  %513 = vmatprep.subr.mxu0 %v250
  %514 = vmatpush1.msra.mxu0 %v249
  %515 = vmatprep.subr.mxu0 %v252
  %516 = vmatpush1.msra.mxu0 %v251
  %517 = vmatprep.subr.mxu0 %v254
  %518 = vmatpush1.msra.mxu0 %v253
  %519 = vmatprep.subr.mxu0 0.0
  %520 = vmatpush1.msra.mxu0 0.0
  %521 = vmatprep.subr.mxu0 0.0
  %522 = vmatpush1.msra.mxu0 0.0
  %523 = vmatprep.subr.mxu0 0.0
  %524 = vmatpush1.msra.mxu0 0.0
  %525 = vmatprep.subr.mxu0 0.0
  %526 = vmatpush1.msra.mxu0 0.0
  %527 = vmatprep.subr.mxu0 0.0
  %528 = vmatpush1.msra.mxu0 0.0
  %529 = vmatprep.subr.mxu0 0.0
  %530 = vmatpush1.msra.mxu0 0.0
  %531 = vmatprep.subr.mxu0 0.0
  %532 = vmatpush1.msra.mxu0 0.0
  %533 = vmatprep.subr.mxu0 0.0
  %534 = vmatpush1.msra.mxu0 0.0
  %535 = vmatprep.subr.mxu0 0.0
  %536 = vmatpush1.msra.mxu0 0.0
  %537 = vmatprep.subr.mxu0 0.0
  %538 = vmatpush1.msra.mxu0 0.0
  %539 = vmatprep.subr.mxu0 0.0
  %540 = vmatpush1.msra.mxu0 0.0
  %541 = vmatprep.subr.mxu0 0.0
  %542 = vmatpush1.msra.mxu0 0.0
  %543 = vmatprep.subr.mxu0 0.0
  %544 = vmatpush1.msra.mxu0 0.0
  %545 = vmatprep.subr.mxu0 0.0
  %546 = vmatpush1.msra.mxu0 0.0
  %547 = vmatprep.subr.mxu0 0.0
  %548 = vmatpush1.msra.mxu0 0.0
  %549 = vmatprep.subr.mxu0 0.0
  %550 = vmatpush1.msra.mxu0 0.0
  %551 = vmatprep.subr.mxu0 0.0
  %552 = vmatpush1.msra.mxu0 0.0
  %553 = vmatprep.subr.mxu0 0.0
  %554 = vmatpush1.msra.mxu0 0.0
  %555 = vmatprep.subr.mxu0 0.0
  %556 = vmatpush1.msra.mxu0 0.0
  %557 = vmatprep.subr.mxu0 0.0
  %558 = vmatpush1.msra.mxu0 0.0
  %559 = vmatprep.subr.mxu0 0.0
  %560 = vmatpush1.msra.mxu0 0.0
  %561 = vmatprep.subr.mxu0 0.0
  %562 = vmatpush1.msra.mxu0 0.0
  %563 = vmatprep.subr.mxu0 0.0
  %564 = vmatpush1.msra.mxu0 0.0
  %565 = vmatprep.subr.mxu0 0.0
  %566 = vmatpush1.msra.mxu0 0.0
  %567 = vmatprep.mubr.f32.mxu0 0.0
  %568 = vmatmul.mubr.f32.gmra.mrb[0].mxu0 %v501
  %v569 = vpop.f32.mrb[0].mxu0
  %v570 = vadd.f32 %v496, %v569
  %v571 = vpop.f32.mrb[0].mxu0
  %v572 = vadd.f32 %v497, %v571
  %573 = vdwg.mxu0
  %v574 = vxor.u32 %v570, 2147483648
  %v575 = vxor.u32 %v572, 2147483648
  %v576 = vmul.f32 %v574, 1.442695
  %v577 = vpow.pop %v576
  %v578 = vmul.f32 %v575, 1.442695
  %v579 = vpow.pop %v578
  %v580 = vadd.f32 %v577, 1.0
  %v581 = vadd.f32 %v579, 1.0
  %v582 = vrcp.pop %v580
  %v583 = vmul.f32 1.0, %v582
  %v584 = vrcp.pop %v581
  %v585 = vmul.f32 1.0, %v584
  %v586 = vtanh.pop %v572
  %v587 = vmul.f32 %v583, %v483
  %589 = vrot.lane.b32.xlu0 %v586, 64
  %v590 = vpop.permute.xlu0 %589
  %v592 = vmul.f32 %v583, %v590
  %594 = vrot.lane.b32.xlu0 %v592, 64
  %v595 = vpop.permute.xlu0 %594
  %v597 = vadd.f32 %v587, %v595
  %v598 = vtanh.pop %v597
  %600 = vrot.lane.b32.xlu0 %v598, 64
  %v601 = vpop.permute.xlu0 %600
  %v603 = vmul.f32 %v585, %v601
  %v605 = vunpack.c.l.s4 1983009808
  %v606 = vunpack.c.0.s8 %v605
  %v607 = vlaneseq
  %v608 = vshrl.u32 %v607, 7
  %v609 = vsub.s32 %v606, %v608
  %v610 = vrot.slane %v220, %v609
  %v611 = vcombine.high %v610, %v610
  %v615 = vsel %vm267, %v603, 0
  %617 = vmatprep.subr.mxu0 %v240
  %618 = vmatpush1.msra.mxu0 %v239
  %619 = vmatprep.subr.mxu0 %v242
  %620 = vmatpush1.msra.mxu0 %v241
  %621 = vmatprep.subr.mxu0 %v244
  %622 = vmatpush1.msra.mxu0 %v243
  %623 = vmatprep.subr.mxu0 %v246
  %624 = vmatpush1.msra.mxu0 %v245
  %625 = vmatprep.subr.mxu0 %v248
  %626 = vmatpush1.msra.mxu0 %v247
  %627 = vmatprep.subr.mxu0 %v250
  %628 = vmatpush1.msra.mxu0 %v249
  %629 = vmatprep.subr.mxu0 %v252
  %630 = vmatpush1.msra.mxu0 %v251
  %631 = vmatprep.subr.mxu0 %v254
  %632 = vmatpush1.msra.mxu0 %v253
  %633 = vmatprep.subr.mxu0 0.0
  %634 = vmatpush1.msra.mxu0 0.0
  %635 = vmatprep.subr.mxu0 0.0
  %636 = vmatpush1.msra.mxu0 0.0
  %637 = vmatprep.subr.mxu0 0.0
  %638 = vmatpush1.msra.mxu0 0.0
  %639 = vmatprep.subr.mxu0 0.0
  %640 = vmatpush1.msra.mxu0 0.0
  %641 = vmatprep.subr.mxu0 0.0
  %642 = vmatpush1.msra.mxu0 0.0
  %643 = vmatprep.subr.mxu0 0.0
  %644 = vmatpush1.msra.mxu0 0.0
  %645 = vmatprep.subr.mxu0 0.0
  %646 = vmatpush1.msra.mxu0 0.0
  %647 = vmatprep.subr.mxu0 0.0
  %648 = vmatpush1.msra.mxu0 0.0
  %649 = vmatprep.subr.mxu0 0.0
  %650 = vmatpush1.msra.mxu0 0.0
  %651 = vmatprep.subr.mxu0 0.0
  %652 = vmatpush1.msra.mxu0 0.0
  %653 = vmatprep.subr.mxu0 0.0
  %654 = vmatpush1.msra.mxu0 0.0
  %655 = vmatprep.subr.mxu0 0.0
  %656 = vmatpush1.msra.mxu0 0.0
  %657 = vmatprep.subr.mxu0 0.0
  %658 = vmatpush1.msra.mxu0 0.0
  %659 = vmatprep.subr.mxu0 0.0
  %660 = vmatpush1.msra.mxu0 0.0
  %661 = vmatprep.subr.mxu0 0.0
  %662 = vmatpush1.msra.mxu0 0.0
  %663 = vmatprep.subr.mxu0 0.0
  %664 = vmatpush1.msra.mxu0 0.0
  %665 = vmatprep.subr.mxu0 0.0
  %666 = vmatpush1.msra.mxu0 0.0
  %667 = vmatprep.subr.mxu0 0.0
  %668 = vmatpush1.msra.mxu0 0.0
  %669 = vmatprep.subr.mxu0 0.0
  %670 = vmatpush1.msra.mxu0 0.0
  %671 = vmatprep.subr.mxu0 0.0
  %672 = vmatpush1.msra.mxu0 0.0
  %673 = vmatprep.subr.mxu0 0.0
  %674 = vmatpush1.msra.mxu0 0.0
  %675 = vmatprep.subr.mxu0 0.0
  %676 = vmatpush1.msra.mxu0 0.0
  %677 = vmatprep.subr.mxu0 0.0
  %678 = vmatpush1.msra.mxu0 0.0
  %679 = vmatprep.subr.mxu0 0.0
  %680 = vmatpush1.msra.mxu0 0.0
  %681 = vmatprep.mubr.f32.mxu0 0.0
  %682 = vmatmul.mubr.f32.gmra.mrb[0].mxu0 %v615
  %v683 = vpop.f32.mrb[0].mxu0
  %v684 = vadd.f32 %v610, %v683
  %v685 = vpop.f32.mrb[0].mxu0
  %v686 = vadd.f32 %v611, %v685
  %687 = vdwg.mxu0
  %v688 = vxor.u32 %v684, 2147483648
  %v689 = vxor.u32 %v686, 2147483648
  %v690 = vmul.f32 %v688, 1.442695
  %v691 = vpow.pop %v690
  %v692 = vmul.f32 %v689, 1.442695
  %v693 = vpow.pop %v692
  %v694 = vadd.f32 %v691, 1.0
  %v695 = vadd.f32 %v693, 1.0
  %v696 = vrcp.pop %v694
  %v697 = vmul.f32 1.0, %v696
  %v698 = vrcp.pop %v695
  %v699 = vmul.f32 1.0, %v698
  %v700 = vtanh.pop %v686
  %v701 = vmul.f32 %v697, %v597
  %703 = vrot.lane.b32.xlu0 %v700, 64
  %v704 = vpop.permute.xlu0 %703
  %v706 = vmul.f32 %v697, %v704
  %708 = vrot.lane.b32.xlu0 %v706, 64
  %v709 = vpop.permute.xlu0 %708
  %v711 = vadd.f32 %v701, %v709
  %v712 = vtanh.pop %v711
  %714 = vrot.lane.b32.xlu0 %v712, 64
  %v715 = vpop.permute.xlu0 %714
  %v717 = vmul.f32 %v699, %v715
  %v719 = vunpack.c.l.s4 1983009808
  %v720 = vunpack.c.0.s8 %v719
  %v721 = vlaneseq
  %v722 = vshrl.u32 %v721, 7
  %v723 = vsub.s32 %v720, %v722
  %v724 = vrot.slane %v229, %v723
  %v725 = vcombine.high %v724, %v724
  %v729 = vsel %vm267, %v717, 0
  %731 = vmatprep.subr.mxu0 %v240
  %732 = vmatpush1.msra.mxu0 %v239
  %733 = vmatprep.subr.mxu0 %v242
  %734 = vmatpush1.msra.mxu0 %v241
  %735 = vmatprep.subr.mxu0 %v244
  %736 = vmatpush1.msra.mxu0 %v243
  %737 = vmatprep.subr.mxu0 %v246
  %738 = vmatpush1.msra.mxu0 %v245
  %739 = vmatprep.subr.mxu0 %v248
  %740 = vmatpush1.msra.mxu0 %v247
  %741 = vmatprep.subr.mxu0 %v250
  %742 = vmatpush1.msra.mxu0 %v249
  %743 = vmatprep.subr.mxu0 %v252
  %744 = vmatpush1.msra.mxu0 %v251
  %745 = vmatprep.subr.mxu0 %v254
  %746 = vmatpush1.msra.mxu0 %v253
  %747 = vmatprep.subr.mxu0 0.0
  %748 = vmatpush1.msra.mxu0 0.0
  %749 = vmatprep.subr.mxu0 0.0
  %750 = vmatpush1.msra.mxu0 0.0
  %751 = vmatprep.subr.mxu0 0.0
  %752 = vmatpush1.msra.mxu0 0.0
  %753 = vmatprep.subr.mxu0 0.0
  %754 = vmatpush1.msra.mxu0 0.0
  %755 = vmatprep.subr.mxu0 0.0
  %756 = vmatpush1.msra.mxu0 0.0
  %757 = vmatprep.subr.mxu0 0.0
  %758 = vmatpush1.msra.mxu0 0.0
  %759 = vmatprep.subr.mxu0 0.0
  %760 = vmatpush1.msra.mxu0 0.0
  %761 = vmatprep.subr.mxu0 0.0
  %762 = vmatpush1.msra.mxu0 0.0
  %763 = vmatprep.subr.mxu0 0.0
  %764 = vmatpush1.msra.mxu0 0.0
  %765 = vmatprep.subr.mxu0 0.0
  %766 = vmatpush1.msra.mxu0 0.0
  %767 = vmatprep.subr.mxu0 0.0
  %768 = vmatpush1.msra.mxu0 0.0
  %769 = vmatprep.subr.mxu0 0.0
  %770 = vmatpush1.msra.mxu0 0.0
  %771 = vmatprep.subr.mxu0 0.0
  %772 = vmatpush1.msra.mxu0 0.0
  %773 = vmatprep.subr.mxu0 0.0
  %774 = vmatpush1.msra.mxu0 0.0
  %775 = vmatprep.subr.mxu0 0.0
  %776 = vmatpush1.msra.mxu0 0.0
  %777 = vmatprep.subr.mxu0 0.0
  %778 = vmatpush1.msra.mxu0 0.0
  %779 = vmatprep.subr.mxu0 0.0
  %780 = vmatpush1.msra.mxu0 0.0
  %781 = vmatprep.subr.mxu0 0.0
  %782 = vmatpush1.msra.mxu0 0.0
  %783 = vmatprep.subr.mxu0 0.0
  %784 = vmatpush1.msra.mxu0 0.0
  %785 = vmatprep.subr.mxu0 0.0
  %786 = vmatpush1.msra.mxu0 0.0
  %787 = vmatprep.subr.mxu0 0.0
  %788 = vmatpush1.msra.mxu0 0.0
  %789 = vmatprep.subr.mxu0 0.0
  %790 = vmatpush1.msra.mxu0 0.0
  %791 = vmatprep.subr.mxu0 0.0
  %792 = vmatpush1.msra.mxu0 0.0
  %793 = vmatprep.subr.mxu0 0.0
  %794 = vmatpush1.msra.mxu0 0.0
  %795 = vmatprep.mubr.f32.mxu0 0.0
  %796 = vmatmul.mubr.f32.gmra.mrb[0].mxu0 %v729
  %v797 = vpop.f32.mrb[0].mxu0
  %v798 = vadd.f32 %v724, %v797
  %v799 = vpop.f32.mrb[0].mxu0
  %v800 = vadd.f32 %v725, %v799
  %801 = vdwg.mxu0
  %v802 = vxor.u32 %v798, 2147483648
  %v803 = vxor.u32 %v800, 2147483648
  %v804 = vmul.f32 %v802, 1.442695
  %v805 = vpow.pop %v804
  %v806 = vmul.f32 %v803, 1.442695
  %v807 = vpow.pop %v806
  %v808 = vadd.f32 %v805, 1.0
  %v809 = vadd.f32 %v807, 1.0
  %v810 = vrcp.pop %v808
  %v811 = vmul.f32 1.0, %v810
  %v812 = vrcp.pop %v809
  %v813 = vmul.f32 1.0, %v812
  %v814 = vtanh.pop %v800
  %v815 = vmul.f32 %v811, %v711
  %817 = vrot.lane.b32.xlu0 %v814, 64
  %v818 = vpop.permute.xlu0 %817
  %v820 = vmul.f32 %v811, %v818
  %822 = vrot.lane.b32.xlu0 %v820, 64
  %v823 = vpop.permute.xlu0 %822
  %v825 = vadd.f32 %v815, %v823
  %v826 = vtanh.pop %v825
  %828 = vrot.lane.b32.xlu0 %v826, 64
  %v829 = vpop.permute.xlu0 %828
  %v831 = vmul.f32 %v813, %v829
  %v833 = vunpack.c.l.s4 1983009808
  %v834 = vunpack.c.0.s8 %v833
  %v835 = vlaneseq
  %v836 = vshrl.u32 %v835, 7
  %v837 = vsub.s32 %v834, %v836
  %v838 = vrot.slane %v237, %v837
  %v839 = vcombine.high %v838, %v838
  %v843 = vsel %vm267, %v831, 0
  %845 = vmatprep.subr.mxu0 %v240
  %846 = vmatpush1.msra.mxu0 %v239
  %847 = vmatprep.subr.mxu0 %v242
  %848 = vmatpush1.msra.mxu0 %v241
  %849 = vmatprep.subr.mxu0 %v244
  %850 = vmatpush1.msra.mxu0 %v243
  %851 = vmatprep.subr.mxu0 %v246
  %852 = vmatpush1.msra.mxu0 %v245
  %853 = vmatprep.subr.mxu0 %v248
  %854 = vmatpush1.msra.mxu0 %v247
  %855 = vmatprep.subr.mxu0 %v250
  %856 = vmatpush1.msra.mxu0 %v249
  %857 = vmatprep.subr.mxu0 %v252
  %858 = vmatpush1.msra.mxu0 %v251
  %859 = vmatprep.subr.mxu0 %v254
  %860 = vmatpush1.msra.mxu0 %v253
  %861 = vmatprep.subr.mxu0 0.0
  %862 = vmatpush1.msra.mxu0 0.0
  %863 = vmatprep.subr.mxu0 0.0
  %864 = vmatpush1.msra.mxu0 0.0
  %865 = vmatprep.subr.mxu0 0.0
  %866 = vmatpush1.msra.mxu0 0.0
  %867 = vmatprep.subr.mxu0 0.0
  %868 = vmatpush1.msra.mxu0 0.0
  %869 = vmatprep.subr.mxu0 0.0
  %870 = vmatpush1.msra.mxu0 0.0
  %871 = vmatprep.subr.mxu0 0.0
  %872 = vmatpush1.msra.mxu0 0.0
  %873 = vmatprep.subr.mxu0 0.0
  %874 = vmatpush1.msra.mxu0 0.0
  %875 = vmatprep.subr.mxu0 0.0
  %876 = vmatpush1.msra.mxu0 0.0
  %877 = vmatprep.subr.mxu0 0.0
  %878 = vmatpush1.msra.mxu0 0.0
  %879 = vmatprep.subr.mxu0 0.0
  %880 = vmatpush1.msra.mxu0 0.0
  %881 = vmatprep.subr.mxu0 0.0
  %882 = vmatpush1.msra.mxu0 0.0
  %883 = vmatprep.subr.mxu0 0.0
  %884 = vmatpush1.msra.mxu0 0.0
  %885 = vmatprep.subr.mxu0 0.0
  %886 = vmatpush1.msra.mxu0 0.0
  %887 = vmatprep.subr.mxu0 0.0
  %888 = vmatpush1.msra.mxu0 0.0
  %889 = vmatprep.subr.mxu0 0.0
  %890 = vmatpush1.msra.mxu0 0.0
  %891 = vmatprep.subr.mxu0 0.0
  %892 = vmatpush1.msra.mxu0 0.0
  %893 = vmatprep.subr.mxu0 0.0
  %894 = vmatpush1.msra.mxu0 0.0
  %895 = vmatprep.subr.mxu0 0.0
  %896 = vmatpush1.msra.mxu0 0.0
  %897 = vmatprep.subr.mxu0 0.0
  %898 = vmatpush1.msra.mxu0 0.0
  %899 = vmatprep.subr.mxu0 0.0
  %900 = vmatpush1.msra.mxu0 0.0
  %901 = vmatprep.subr.mxu0 0.0
  %902 = vmatpush1.msra.mxu0 0.0
  %903 = vmatprep.subr.mxu0 0.0
  %904 = vmatpush1.msra.mxu0 0.0
  %905 = vmatprep.subr.mxu0 0.0
  %906 = vmatpush1.msra.mxu0 0.0
  %907 = vmatprep.subr.mxu0 0.0
  %908 = vmatpush1.msra.mxu0 0.0
  %909 = vmatprep.mubr.f32.mxu0 0.0
  %910 = vmatmul.mubr.f32.gmra.mrb[0].mxu0 %v843
  %v911 = vpop.f32.mrb[0].mxu0
  %v912 = vadd.f32 %v838, %v911
  %v913 = vpop.f32.mrb[0].mxu0
  %v914 = vadd.f32 %v839, %v913
  %915 = vdwg.mxu0
  %v916 = vxor.u32 %v912, 2147483648
  %v917 = vxor.u32 %v914, 2147483648
  %v918 = vmul.f32 %v916, 1.442695
  %v919 = vpow.pop %v918
  %v920 = vmul.f32 %v917, 1.442695
  %v921 = vpow.pop %v920
  %v922 = vadd.f32 %v919, 1.0
  %v923 = vadd.f32 %v921, 1.0
  %v924 = vrcp.pop %v922
  %v925 = vmul.f32 1.0, %v924
  %v926 = vrcp.pop %v923
  %v927 = vmul.f32 1.0, %v926
  %v928 = vtanh.pop %v914
  %v929 = vmul.f32 %v925, %v825
  %931 = vrot.lane.b32.xlu0 %v928, 64
  %v932 = vpop.permute.xlu0 %931
  %v934 = vmul.f32 %v925, %v932
  %936 = vrot.lane.b32.xlu0 %v934, 64
  %v937 = vpop.permute.xlu0 %936
  %v939 = vadd.f32 %v929, %v937
  %v940 = vtanh.pop %v939
  %942 = vrot.lane.b32.xlu0 %v940, 64
  %v943 = vpop.permute.xlu0 %942
  %v945 = vmul.f32 %v927, %v943
  %v947 = vunpack.c.l.s4 1983009808
  %v948 = vunpack.c.0.s8 %v947
  %v949 = vlaneseq
  %v950 = vshrl.u32 %v949, 7
  %v951 = vsub.s32 %v948, %v950
  %v952 = vrot.slane %v236, %v951
  %v953 = vcombine.high %v952, %v952
  %v957 = vsel %vm267, %v945, 0
  %959 = vmatprep.subr.mxu0 %v240
  %960 = vmatpush1.msra.mxu0 %v239
  %961 = vmatprep.subr.mxu0 %v242
  %962 = vmatpush1.msra.mxu0 %v241
  %963 = vmatprep.subr.mxu0 %v244
  %964 = vmatpush1.msra.mxu0 %v243
  %965 = vmatprep.subr.mxu0 %v246
  %966 = vmatpush1.msra.mxu0 %v245
  %967 = vmatprep.subr.mxu0 %v248
  %968 = vmatpush1.msra.mxu0 %v247
  %969 = vmatprep.subr.mxu0 %v250
  %970 = vmatpush1.msra.mxu0 %v249
  %971 = vmatprep.subr.mxu0 %v252
  %972 = vmatpush1.msra.mxu0 %v251
  %973 = vmatprep.subr.mxu0 %v254
  %974 = vmatpush1.msra.mxu0 %v253
  %975 = vmatprep.subr.mxu0 0.0
  %976 = vmatpush1.msra.mxu0 0.0
  %977 = vmatprep.subr.mxu0 0.0
  %978 = vmatpush1.msra.mxu0 0.0
  %979 = vmatprep.subr.mxu0 0.0
  %980 = vmatpush1.msra.mxu0 0.0
  %981 = vmatprep.subr.mxu0 0.0
  %982 = vmatpush1.msra.mxu0 0.0
  %983 = vmatprep.subr.mxu0 0.0
  %984 = vmatpush1.msra.mxu0 0.0
  %985 = vmatprep.subr.mxu0 0.0
  %986 = vmatpush1.msra.mxu0 0.0
  %987 = vmatprep.subr.mxu0 0.0
  %988 = vmatpush1.msra.mxu0 0.0
  %989 = vmatprep.subr.mxu0 0.0
  %990 = vmatpush1.msra.mxu0 0.0
  %991 = vmatprep.subr.mxu0 0.0
  %992 = vmatpush1.msra.mxu0 0.0
  %993 = vmatprep.subr.mxu0 0.0
  %994 = vmatpush1.msra.mxu0 0.0
  %995 = vmatprep.subr.mxu0 0.0
  %996 = vmatpush1.msra.mxu0 0.0
  %997 = vmatprep.subr.mxu0 0.0
  %998 = vmatpush1.msra.mxu0 0.0
  %999 = vmatprep.subr.mxu0 0.0
  %1000 = vmatpush1.msra.mxu0 0.0
  %1001 = vmatprep.subr.mxu0 0.0
  %1002 = vmatpush1.msra.mxu0 0.0
  %1003 = vmatprep.subr.mxu0 0.0
  %1004 = vmatpush1.msra.mxu0 0.0
  %1005 = vmatprep.subr.mxu0 0.0
  %1006 = vmatpush1.msra.mxu0 0.0
  %1007 = vmatprep.subr.mxu0 0.0
  %1008 = vmatpush1.msra.mxu0 0.0
  %1009 = vmatprep.subr.mxu0 0.0
  %1010 = vmatpush1.msra.mxu0 0.0
  %1011 = vmatprep.subr.mxu0 0.0
  %1012 = vmatpush1.msra.mxu0 0.0
  %1013 = vmatprep.subr.mxu0 0.0
  %1014 = vmatpush1.msra.mxu0 0.0
  %1015 = vmatprep.subr.mxu0 0.0
  %1016 = vmatpush1.msra.mxu0 0.0
  %1017 = vmatprep.subr.mxu0 0.0
  %1018 = vmatpush1.msra.mxu0 0.0
  %1019 = vmatprep.subr.mxu0 0.0
  %1020 = vmatpush1.msra.mxu0 0.0
  %1021 = vmatprep.subr.mxu0 0.0
  %1022 = vmatpush1.msra.mxu0 0.0
  %1023 = vmatprep.mubr.f32.mxu0 0.0
  %1024 = vmatmul.mubr.f32.gmra.mrb[0].mxu0 %v957
  %v1025 = vpop.f32.mrb[0].mxu0
  %v1026 = vadd.f32 %v952, %v1025
  %v1027 = vpop.f32.mrb[0].mxu0
  %v1028 = vadd.f32 %v953, %v1027
  %1029 = vdwg.mxu0
  %v1030 = vxor.u32 %v1026, 2147483648
  %v1031 = vxor.u32 %v1028, 2147483648
  %v1032 = vmul.f32 %v1030, 1.442695
  %v1033 = vpow.pop %v1032
  %v1034 = vmul.f32 %v1031, 1.442695
  %v1035 = vpow.pop %v1034
  %v1036 = vadd.f32 %v1033, 1.0
  %v1037 = vadd.f32 %v1035, 1.0
  %v1038 = vrcp.pop %v1036
  %v1039 = vmul.f32 1.0, %v1038
  %v1040 = vrcp.pop %v1037
  %v1041 = vmul.f32 1.0, %v1040
  %v1042 = vtanh.pop %v1028
  %v1043 = vmul.f32 %v1039, %v939
  %1045 = vrot.lane.b32.xlu0 %v1042, 64
  %v1046 = vpop.permute.xlu0 %1045
  %v1048 = vmul.f32 %v1039, %v1046
  %1050 = vrot.lane.b32.xlu0 %v1048, 64
  %v1051 = vpop.permute.xlu0 %1050
  %v1053 = vadd.f32 %v1043, %v1051
  %v1054 = vtanh.pop %v1053
  %1056 = vrot.lane.b32.xlu0 %v1054, 64
  %v1057 = vpop.permute.xlu0 %1056
  %v1059 = vmul.f32 %v1041, %v1057
  %v1061 = vunpack.c.l.s4 1983009808
  %v1062 = vunpack.c.0.s8 %v1061
  %v1063 = vlaneseq
  %v1064 = vshrl.u32 %v1063, 7
  %v1065 = vsub.s32 %v1062, %v1064
  %v1066 = vrot.slane %v238, %v1065
  %v1067 = vcombine.high %v1066, %v1066
  %v1071 = vsel %vm267, %v1059, 0
  %1073 = vmatprep.subr.mxu0 %v240
  %1074 = vmatpush1.msra.mxu0 %v239
  %1075 = vmatprep.subr.mxu0 %v242
  %1076 = vmatpush1.msra.mxu0 %v241
  %1077 = vmatprep.subr.mxu0 %v244
  %1078 = vmatpush1.msra.mxu0 %v243
  %1079 = vmatprep.subr.mxu0 %v246
  %1080 = vmatpush1.msra.mxu0 %v245
  %1081 = vmatprep.subr.mxu0 %v248
  %1082 = vmatpush1.msra.mxu0 %v247
  %1083 = vmatprep.subr.mxu0 %v250
  %1084 = vmatpush1.msra.mxu0 %v249
  %1085 = vmatprep.subr.mxu0 %v252
  %1086 = vmatpush1.msra.mxu0 %v251
  %1087 = vmatprep.subr.mxu0 %v254
  %1088 = vmatpush1.msra.mxu0 %v253
  %1089 = vmatprep.subr.mxu0 0.0
  %1090 = vmatpush1.msra.mxu0 0.0
  %1091 = vmatprep.subr.mxu0 0.0
  %1092 = vmatpush1.msra.mxu0 0.0
  %1093 = vmatprep.subr.mxu0 0.0
  %1094 = vmatpush1.msra.mxu0 0.0
  %1095 = vmatprep.subr.mxu0 0.0
  %1096 = vmatpush1.msra.mxu0 0.0
  %1097 = vmatprep.subr.mxu0 0.0
  %1098 = vmatpush1.msra.mxu0 0.0
  %1099 = vmatprep.subr.mxu0 0.0
  %1100 = vmatpush1.msra.mxu0 0.0
  %1101 = vmatprep.subr.mxu0 0.0
  %1102 = vmatpush1.msra.mxu0 0.0
  %1103 = vmatprep.subr.mxu0 0.0
  %1104 = vmatpush1.msra.mxu0 0.0
  %1105 = vmatprep.subr.mxu0 0.0
  %1106 = vmatpush1.msra.mxu0 0.0
  %1107 = vmatprep.subr.mxu0 0.0
  %1108 = vmatpush1.msra.mxu0 0.0
  %1109 = vmatprep.subr.mxu0 0.0
  %1110 = vmatpush1.msra.mxu0 0.0
  %1111 = vmatprep.subr.mxu0 0.0
  %1112 = vmatpush1.msra.mxu0 0.0
  %1113 = vmatprep.subr.mxu0 0.0
  %1114 = vmatpush1.msra.mxu0 0.0
  %1115 = vmatprep.subr.mxu0 0.0
  %1116 = vmatpush1.msra.mxu0 0.0
  %1117 = vmatprep.subr.mxu0 0.0
  %1118 = vmatpush1.msra.mxu0 0.0
  %1119 = vmatprep.subr.mxu0 0.0
  %1120 = vmatpush1.msra.mxu0 0.0
  %1121 = vmatprep.subr.mxu0 0.0
  %1122 = vmatpush1.msra.mxu0 0.0
  %1123 = vmatprep.subr.mxu0 0.0
  %1124 = vmatpush1.msra.mxu0 0.0
  %1125 = vmatprep.subr.mxu0 0.0
  %1126 = vmatpush1.msra.mxu0 0.0
  %1127 = vmatprep.subr.mxu0 0.0
  %1128 = vmatpush1.msra.mxu0 0.0
  %1129 = vmatprep.subr.mxu0 0.0
  %1130 = vmatpush1.msra.mxu0 0.0
  %1131 = vmatprep.subr.mxu0 0.0
  %1132 = vmatpush1.msra.mxu0 0.0
  %1133 = vmatprep.subr.mxu0 0.0
  %1134 = vmatpush1.msra.mxu0 0.0
  %1135 = vmatprep.subr.mxu0 0.0
  %1136 = vmatpush1.msra.mxu0 0.0
  %1137 = vmatprep.mubr.f32.mxu0 0.0
  %1138 = vmatmul.mubr.f32.gmra.mrb[0].mxu0 %v1071
  %v1139 = vpop.f32.mrb[0].mxu0
  %v1140 = vadd.f32 %v1066, %v1139
  %v1141 = vpop.f32.mrb[0].mxu0
  %v1142 = vadd.f32 %v1067, %v1141
  %1143 = vdwg.mxu0
  %v1144 = vxor.u32 %v1140, 2147483648
  %v1145 = vxor.u32 %v1142, 2147483648
  %v1146 = vmul.f32 %v1144, 1.442695
  %v1147 = vpow.pop %v1146
  %v1148 = vmul.f32 %v1145, 1.442695
  %v1149 = vpow.pop %v1148
  %v1150 = vadd.f32 %v1147, 1.0
  %v1151 = vadd.f32 %v1149, 1.0
  %v1152 = vrcp.pop %v1150
  %v1153 = vmul.f32 1.0, %v1152
  %v1154 = vrcp.pop %v1151
  %v1155 = vmul.f32 1.0, %v1154
  %v1156 = vtanh.pop %v1142
  %v1157 = vmul.f32 %v1153, %v1053
  %1159 = vrot.lane.b32.xlu0 %v1156, 64
  %v1160 = vpop.permute.xlu0 %1159
  %v1162 = vmul.f32 %v1153, %v1160
  %1164 = vrot.lane.b32.xlu0 %v1162, 64
  %v1165 = vpop.permute.xlu0 %1164
  %v1167 = vadd.f32 %v1157, %v1165
  %v1168 = vtanh.pop %v1167
  %1170 = vrot.lane.b32.xlu0 %v1168, 64
  %v1171 = vpop.permute.xlu0 %1170
  %v1173 = vmul.f32 %v1155, %v1171
  %v1174 = vrot.slane %v489, 6
  %v1176 = vrot.slane %v603, 4
  %v1178 = vrot.slane %v717, 2
  %v1180 = vrot.slane %v945, 6
  %v1182 = vrot.slane %v1059, 4
  %v1185 = vrot.slane %v1173, 2
  %vm1187 = vcmask 1041408
  %v1188 = vsel %vm1187, %v375, %v1174
  %vm1189 = vcmask 1043456
  %v1190 = vsel %vm1189, %v1188, %v1176
  %vm1191 = vcmask 1045504
  %v1192 = vsel %vm1191, %v1190, %v1178
  %v1193 = vsel %vm1187, %v831, %v1180
  %v1194 = vsel %vm1189, %v1193, %v1182
  %v1195 = vsel %vm1191, %v1194, %v1185
  %v1196 = vld [vmem:[%s6] sm:$0xff]
  %v1197 = vld [vmem:[%s6 + $0x8] sm:$0xff]
  %v1198 = vld [vmem:[%s6 + $0x10] sm:$0xff]
  %v1199 = vld [vmem:[%s6 + $0x18] sm:$0xff]
  %v1200 = vld [vmem:[%s6 + $0x20] sm:$0xff]
  %v1201 = vld [vmem:[%s6 + $0x28] sm:$0xff]
  %v1202 = vld [vmem:[%s6 + $0x30] sm:$0xff]
  %v1203 = vld [vmem:[%s6 + $0x38] sm:$0xff]
  %v1204 = vld [vmem:[%s7] sm:$0x1]
  %v1206 = vlaneseq
  %v1207 = vshrl.u32 %v1206, 7
  %v1208 = vsub.s32 0, %v1207
  %v1209 = vrot.slane %v1204, %v1208
  %v1212 = vsel %vm267, %v1192, 0
  %v1215 = vsel %vm267, %v1195, 0
  %1217 = vmatprep.subr.mxu0 0.0
  %1218 = vmatpush1.msra.mxu0 %v1196
  %1219 = vmatprep.subr.mxu0 0.0
  %1220 = vmatpush1.msra.mxu0 %v1197
  %1221 = vmatprep.subr.mxu0 0.0
  %1222 = vmatpush1.msra.mxu0 %v1198
  %1223 = vmatprep.subr.mxu0 0.0
  %1224 = vmatpush1.msra.mxu0 %v1199
  %1225 = vmatprep.subr.mxu0 0.0
  %1226 = vmatpush1.msra.mxu0 %v1200
  %1227 = vmatprep.subr.mxu0 0.0
  %1228 = vmatpush1.msra.mxu0 %v1201
  %1229 = vmatprep.subr.mxu0 0.0
  %1230 = vmatpush1.msra.mxu0 %v1202
  %1231 = vmatprep.subr.mxu0 0.0
  %1232 = vmatpush1.msra.mxu0 %v1203
  %1233 = vmatprep.subr.mxu0 0.0
  %1234 = vmatpush1.msra.mxu0 0.0
  %1235 = vmatprep.subr.mxu0 0.0
  %1236 = vmatpush1.msra.mxu0 0.0
  %1237 = vmatprep.subr.mxu0 0.0
  %1238 = vmatpush1.msra.mxu0 0.0
  %1239 = vmatprep.subr.mxu0 0.0
  %1240 = vmatpush1.msra.mxu0 0.0
  %1241 = vmatprep.subr.mxu0 0.0
  %1242 = vmatpush1.msra.mxu0 0.0
  %1243 = vmatprep.subr.mxu0 0.0
  %1244 = vmatpush1.msra.mxu0 0.0
  %1245 = vmatprep.subr.mxu0 0.0
  %1246 = vmatpush1.msra.mxu0 0.0
  %1247 = vmatprep.subr.mxu0 0.0
  %1248 = vmatpush1.msra.mxu0 0.0
  %1249 = vmatprep.subr.mxu0 0.0
  %1250 = vmatpush1.msra.mxu0 0.0
  %1251 = vmatprep.subr.mxu0 0.0
  %1252 = vmatpush1.msra.mxu0 0.0
  %1253 = vmatprep.subr.mxu0 0.0
  %1254 = vmatpush1.msra.mxu0 0.0
  %1255 = vmatprep.subr.mxu0 0.0
  %1256 = vmatpush1.msra.mxu0 0.0
  %1257 = vmatprep.subr.mxu0 0.0
  %1258 = vmatpush1.msra.mxu0 0.0
  %1259 = vmatprep.subr.mxu0 0.0
  %1260 = vmatpush1.msra.mxu0 0.0
  %1261 = vmatprep.subr.mxu0 0.0
  %1262 = vmatpush1.msra.mxu0 0.0
  %1263 = vmatprep.subr.mxu0 0.0
  %1264 = vmatpush1.msra.mxu0 0.0
  %1265 = vmatprep.subr.mxu0 0.0
  %1266 = vmatpush1.msra.mxu0 0.0
  %1267 = vmatprep.subr.mxu0 0.0
  %1268 = vmatpush1.msra.mxu0 0.0
  %1269 = vmatprep.subr.mxu0 0.0
  %1270 = vmatpush1.msra.mxu0 0.0
  %1271 = vmatprep.subr.mxu0 0.0
  %1272 = vmatpush1.msra.mxu0 0.0
  %1273 = vmatprep.subr.mxu0 0.0
  %1274 = vmatpush1.msra.mxu0 0.0
  %1275 = vmatprep.subr.mxu0 0.0
  %1276 = vmatpush1.msra.mxu0 0.0
  %1277 = vmatprep.subr.mxu0 0.0
  %1278 = vmatpush1.msra.mxu0 0.0
  %1279 = vmatprep.subr.mxu0 0.0
  %1280 = vmatpush1.msra.mxu0 0.0
  %1281 = vmatprep.mubr.f32.mxu0 0.0
  %1282 = vmatmul.mubr.f32.gmra.mrb[0].mxu0 %v1212
  %v1283 = vpop.f32.mrb[0].mxu0
  %v1284 = vadd.f32 %v1209, %v1283
  %v1285 = vpop.f32.mrb[0].mxu0
  %1286 = vmatprep.mubr.f32.mxu0 0.0
  %1287 = vmatmul.mubr.f32.gmra.mrb[0].mxu0 %v1215
  %v1288 = vpop.f32.mrb[0].mxu0
  %v1289 = vadd.f32 %v1209, %v1288
  %v1290 = vpop.f32.mrb[0].mxu0
  %1291 = vdwg.mxu0
  %1294 = vrot.lane.b32.xlu0 %v1284, 127
  %v1295 = vpop.permute.xlu0 %1294
  %1296 = vrot.lane.b32.xlu0 %v1289, 127
  %v1297 = vpop.permute.xlu0 %1296
  %v1300 = vmax.f32 %v1284, %v1295
  %v1301 = vmax.f32 %v1289, %v1297
  %v1302 = vsub.f32 %v1284, %v1300
  %v1303 = vsub.f32 %v1289, %v1301
  %v1304 = vmul.f32 %v1302, 1.442695
  %v1305 = vpow.pop %v1304
  %v1306 = vmul.f32 %v1303, 1.442695
  %v1307 = vpow.pop %v1306
  %1310 = vrot.lane.b32.xlu0 %v1300, 1
  %v1311 = vpop.permute.xlu0 %1310
  %1312 = vrot.lane.b32.xlu0 %v1301, 1
  %v1313 = vpop.permute.xlu0 %1312
  %v1316 = vsub.f32 %v1284, %v1311
  %v1317 = vsub.f32 %v1289, %v1313
  %v1318 = vmul.f32 %v1316, 1.442695
  %v1319 = vpow.pop %v1318
  %v1320 = vmul.f32 %v1317, 1.442695
  %v1321 = vpow.pop %v1320
  %1324 = vrot.lane.b32.xlu0 %v1319, 127
  %v1325 = vpop.permute.xlu0 %1324
  %1326 = vrot.lane.b32.xlu0 %v1321, 127
  %v1327 = vpop.permute.xlu0 %1326
  %v1330 = vadd.f32 %v1305, %v1325
  %v1331 = vadd.f32 %v1307, %v1327
  %v1332 = vlog2.pop %v1330
  %v1333 = vmul.f32 %v1332, 0.6931472
  %v1334 = vlog2.pop %v1331
  %v1335 = vmul.f32 %v1334, 0.6931472
  %v1336 = vadd.f32 %v1300, %v1333
  %v1337 = vadd.f32 %v1301, %v1335
  %1339 = vset.pattern.permute.xlu0 0
  %1340 = vperm.xlu0 %1339, %v1336
  %v1341 = vpop.permute.xlu0 %1340
  %1344 = vset.pattern.permute.xlu0 0
  %1345 = vperm.xlu0 %1344, %v1337
  %v1346 = vpop.permute.xlu0 %1345
  %v1348 = vsub.f32 %v1284, %v1341
  %v1349 = vsub.f32 %v1289, %v1346
  %1350 = vset.pattern.permute.xlu0 2
  %1351 = vperm.xlu0 %1350, %v1336
  %v1352 = vpop.permute.xlu0 %1351
  %1354 = vset.pattern.permute.xlu0 2
  %1355 = vperm.xlu0 %1354, %v1337
  %v1356 = vpop.permute.xlu0 %1355
  %v1358 = vsub.f32 %v1284, %v1352
  %v1359 = vsub.f32 %v1289, %v1356
  %vm1360 = vcmask 15360
  %v1361 = vsel %vm1360, %v1348, %v1358
  %v1362 = vsel %vm1360, %v1349, %v1359
  %vm1363 = vcmask 31744
  %1364 = vst.msk [vmem:[%s8] sm:$0xff] %vm1363, %v1361
  %1365 = vst.msk [vmem:[%s8 + $0x8] sm:$0xff] %vm1363, %v1362
  // Predicated region
  $region34: #{librosa_features_rnn_forward.1} parent=0 // pred_check
    _
  $region35: #{librosa_features_rnn_forward.1} parent=0 // pred_check_branch
    %1367 = sbr.rel (0) target = $region37
  $region36: #{librosa_features_rnn_forward.1} parent=0 // pred_region
    _
  $region37: #{librosa_features_rnn_forward.1} parent=0 // pred_fallthru
    _
  // Predicated region
  $region38: #{librosa_features_rnn_forward.1} parent=0 // pred_check
    _
  $region39: #{librosa_features_rnn_forward.1} parent=0 // pred_check_branch
    %1369 = sbr.rel (0) target = $region41
  $region40: #{librosa_features_rnn_forward.1} parent=0 // pred_region
    _
  $region41: #{librosa_features_rnn_forward.1} parent=0 // pred_fallthru
    _

</llo_original>
